<compile_context>
chip_gen: v6e
topology: v6e:2x2x1
jax: 0.10.0
libtpu: 0.0.40
codegen_flags: <defaults>
</compile_context>

<pallas_src>
import jax
import jax.numpy as jnp
from jax.experimental import pallas as pl
from jax.experimental.pallas import tpu as pltpu


def gru_seq_kernel(gi_ref, whh_ref, bhhn_ref, out_ref, h_scr):
    """Processes one block of `Tt` timesteps of the GRU recurrence.

    gi_ref:   (B, Tt, 3H)  precomputed x@W_ih + b_ih (+ b_hh for r,z), gate
                           order (r, z, n) along the last axis.
    whh_ref:  (H, 3H)      packed hidden-to-hidden weights (r, z, n).
    bhhn_ref: (1, H)       hidden bias of the n gate (must stay inside r*(.)).
    out_ref:  (B, Tt, H)   per-step hidden states.
    h_scr:    (B, H) f32   recurrent state, persists across grid steps.
    """

    @pl.when(pl.program_id(0) == 0)
    def _():
        h_scr[...] = jnp.zeros_like(h_scr)

    H = out_ref.shape[-1]
    Tt = out_ref.shape[1]

    whh = whh_ref[...]        # hoisted: loaded once per time block
    bhh_n = bhhn_ref[...]     # (1, H)

    h = h_scr[...]            # (B, H) f32
    for tt in range(Tt):      # static unroll over the time block
        gi = gi_ref[:, tt, :]                                           # (B, 3H)
        gh = jnp.dot(h, whh, preferred_element_type=jnp.float32)        # (B, 3H)
        r = jax.nn.sigmoid(gi[:, :H] + gh[:, :H])
        z = jax.nn.sigmoid(gi[:, H:2 * H] + gh[:, H:2 * H])
        n = jnp.tanh(gi[:, 2 * H:] + r * (gh[:, 2 * H:] + bhh_n))
        h = (1.0 - z) * n + z * h
        out_ref[:, tt, :] = h.astype(out_ref.dtype)

    h_scr[...] = h


def gru_encoder_forward(x, params, *, time_block=8):
    """x: (B, S, I) float32, batch_first like the PyTorch module.

    Returns (output, h) with output (B, S, H) and h (1, B, H).
    """
    wih, whh, bih, bhh = params["wih"], params["whh"], params["bih"], params["bhh"]
    B, S, I = x.shape
    H = whh.shape[0]

    # ---- Parallel phase (plain XLA, full MXU efficiency): input projections.
    gi = jnp.einsum("bsi,ih->bsh", x, wih,
                    preferred_element_type=jnp.float32,
                    precision=jax.lax.Precision.HIGHEST) + bih          # (B, S, 3H)
    # Fold b_hh for the r and z gates into GI (b_hh of n must stay inside r*(.)).
    gi = gi.at[..., : 2 * H].add(bhh[0, : 2 * H])
    bhh_n = bhh[:, 2 * H:]                                              # (1, H)

    # ---- Pad batch to a sublane multiple and seq to a multiple of time_block.
    Tt = time_block
    B_pad = -(-B // 8) * 8
    S_pad = -(-S // Tt) * Tt
    gi_p = jnp.pad(gi, ((0, B_pad - B), (0, S_pad - S), (0, 0)))

    # ---- Sequential phase: the recurrence, Tt timesteps per grid iteration.
    out_p = pl.pallas_call(
        gru_seq_kernel,
        out_shape=jax.ShapeDtypeStruct((B_pad, S_pad, H), x.dtype),
        grid_spec=pltpu.PrefetchScalarGridSpec(
            num_scalar_prefetch=0,
            grid=(S_pad // Tt,),
            in_specs=[
                pl.BlockSpec((B_pad, Tt, 3 * H), lambda t: (0, t, 0)),  # GI block
                pl.BlockSpec((H, 3 * H), lambda t: (0, 0)),             # W_hh packed
                pl.BlockSpec((1, H), lambda t: (0, 0)),                 # b_hh (n gate)
            ],
            out_specs=pl.BlockSpec((B_pad, Tt, H), lambda t: (0, t, 0)),
            scratch_shapes=[pltpu.VMEM((B_pad, H), jnp.float32)],       # recurrent state
        ),
        compiler_params=pltpu.CompilerParams(
            dimension_semantics=("arbitrary",),  # time recurrence is sequential
        ),
    )(gi_p, whh, bhh_n)

    output = out_p[:B, :S]           # (B, S, H) batch_first, no transposes
    h = output[:, S - 1][None]       # (1, B, H) == h.reshape(num_layers, B, -1)
    return output, h


def init_gru_params(key, input_size, hidden_size):
    """Deterministic init mimicking nn.GRU: U(-1/sqrt(H), 1/sqrt(H)).

    Stored packed and pre-transposed, PyTorch gate order (r, z, n):
      wih: (I, 3H)  == weight_ih_l0 (3H, I) transposed
      whh: (H, 3H)
      bih/bhh: (1, 3H)
    """
    bound = 1.0 / jnp.sqrt(hidden_size)
    k1, k2, k3, k4 = jax.random.split(key, 4)
    wih = jax.random.uniform(k1, (input_size, 3 * hidden_size), jnp.float32, -bound, bound)
    whh = jax.random.uniform(k2, (hidden_size, 3 * hidden_size), jnp.float32, -bound, bound)
    bih = jax.random.uniform(k3, (1, 3 * hidden_size), jnp.float32, -bound, bound)
    bhh = jax.random.uniform(k4, (1, 3 * hidden_size), jnp.float32, -bound, bound)
    return {"wih": wih, "whh": whh, "bih": bih, "bhh": bhh}


def gru_reference(x, params):
    """Pure-JAX reference (lax.scan) with identical semantics, for checking."""
    wih, whh, bih, bhh = params["wih"], params["whh"], params["bih"], params["bhh"]
    B = x.shape[0]
    H = whh.shape[0]

    def step(h, x_t):
        gi = jnp.dot(x_t, wih, precision=jax.lax.Precision.HIGHEST) + bih[0]
        gh = jnp.dot(h, whh, precision=jax.lax.Precision.HIGHEST) + bhh[0]
        r = jax.nn.sigmoid(gi[:, :H] + gh[:, :H])
        z = jax.nn.sigmoid(gi[:, H:2 * H] + gh[:, H:2 * H])
        n = jnp.tanh(gi[:, 2 * H:] + r * gh[:, 2 * H:])
        h_new = (1.0 - z) * n + z * h
        return h_new, h_new

    h0 = jnp.zeros((B, H), jnp.float32)
    h_last, ys = jax.lax.scan(step, h0, jnp.transpose(x, (1, 0, 2)))
    return jnp.transpose(ys, (1, 0, 2)), h_last[None]


if __name__ == "__main__":
    # Small shapes consistent with the module's forward (batch_first GRU input).
    B, S, I, H = 2, 8, 16, 32

    key = jax.random.PRNGKey(0)
    kx, kp = jax.random.split(key)
    x = jax.random.normal(kx, (B, S, I), jnp.float32)
    params = init_gru_params(kp, I, H)

    output, h = gru_encoder_forward(x, params)
    output, h = jax.block_until_ready((output, h))

    ref_out, ref_h = gru_reference(x, params)
    assert output.shape == (B, S, H) and h.shape == (1, B, H)
    assert jnp.allclose(output, ref_out, atol=1e-4, rtol=1e-4), "output mismatch"
    assert jnp.allclose(h, ref_h, atol=1e-4, rtol=1e-4), "hidden mismatch"

    print("KERNEL_OK")
</pallas_src>

<mosaic_0001>
module attributes {stable_mosaic.version = 11 : i64} {
  func.func @gru_seq_kernel(%arg0: i32, %arg1: memref<8x8x96xf32, #tpu.memory_space<vmem>>, %arg2: memref<32x96xf32, #tpu.memory_space<vmem>>, %arg3: memref<1x32xf32, #tpu.memory_space<vmem>>, %arg4: memref<8x8x32xf32, #tpu.memory_space<vmem>>, %arg5: memref<8x32xf32, #tpu.memory_space<vmem>>) attributes {dimension_semantics = [#tpu.dimension_semantics<arbitrary>], iteration_bounds = array<i64: 1>, scalar_prefetch = 0 : i64, scratch_operands = 1 : i64, tpu.core_type = #tpu.core_type<tc>, window_params = [{transform_indices = @transform_0, window_bounds = array<i64: 8, 8, 96>}, {pipeline_mode = #tpu.pipeline_mode<synchronous>, transform_indices = @transform_1, window_bounds = array<i64: 32, 96>}, {pipeline_mode = #tpu.pipeline_mode<synchronous>, transform_indices = @transform_2, window_bounds = array<i64: 1, 32>}, {transform_indices = @transform_3, window_bounds = array<i64: 8, 8, 32>}]} {
    %c0_i32 = arith.constant 0 : i32
    %0 = arith.cmpi eq, %arg0, %c0_i32 : i32
    %1 = arith.extui %0 : i1 to i32
    %c0_i32_0 = arith.constant 0 : i32
    %2 = arith.cmpi ne, %1, %c0_i32_0 : i32
    scf.if %2 {
      %cst_80 = arith.constant 0.000000e+00 : f32
      %279 = vector.broadcast %cst_80 : f32 to vector<8x32xf32>
      %c0_81 = arith.constant 0 : index
      %c0_82 = arith.constant 0 : index
      %280 = vector.load %arg5[%c0_81, %c0_82] : memref<8x32xf32, #tpu.memory_space<vmem>>, vector<8x32xf32>
      tpu.vector_store %arg5[%c0_81, %c0_82], %279 {strides = array<i32>} : memref<8x32xf32, #tpu.memory_space<vmem>>, vector<8x32xf32>,
    } else {
    }
    %c0 = arith.constant 0 : index
    %c0_1 = arith.constant 0 : index
    %3 = vector.load %arg2[%c0, %c0_1] : memref<32x96xf32, #tpu.memory_space<vmem>>, vector<32x96xf32>
    %c0_2 = arith.constant 0 : index
    %c0_3 = arith.constant 0 : index
    %4 = vector.load %arg3[%c0_2, %c0_3] : memref<1x32xf32, #tpu.memory_space<vmem>>, vector<1x32xf32>
    %c0_4 = arith.constant 0 : index
    %c0_5 = arith.constant 0 : index
    %5 = vector.load %arg5[%c0_4, %c0_5] : memref<8x32xf32, #tpu.memory_space<vmem>>, vector<8x32xf32>
    %c0_6 = arith.constant 0 : index
    %c0_7 = arith.constant 0 : index
    %c0_8 = arith.constant 0 : index
    %6 = vector.load %arg1[%c0_6, %c0_7, %c0_8] : memref<8x8x96xf32, #tpu.memory_space<vmem>>, vector<8x1x96xf32>
    %7 = vector.shape_cast %6 : vector<8x1x96xf32> to vector<8x96xf32>
    %cst = arith.constant dense<0.000000e+00> : vector<8x96xf32>
    %8 = tpu.matmul %5, %3, %cst {dimension_numbers = #tpu.dot_dimension_numbers<[1], [0], [0], [1], [0, 0, 1, 1], [], []>} : vector<8x32xf32>, vector<32x96xf32>, vector<8x96xf32> -> vector<8x96xf32>
    %9 = vector.extract_strided_slice %7 {offsets = [0, 0], sizes = [8, 32], strides = [1, 1]} : vector<8x96xf32> to vector<8x32xf32>
    %10 = vector.extract_strided_slice %8 {offsets = [0, 0], sizes = [8, 32], strides = [1, 1]} : vector<8x96xf32> to vector<8x32xf32>
    %11 = arith.addf %9, %10 : vector<8x32xf32>
    %12 = arith.negf %11 : vector<8x32xf32>
    %13 = math.exp %12 : vector<8x32xf32>
    %cst_9 = arith.constant 1.000000e+00 : f32
    %14 = vector.broadcast %cst_9 : f32 to vector<8x32xf32>
    %15 = arith.addf %14, %13 : vector<8x32xf32>
    %16 = arith.divf %14, %15 : vector<8x32xf32>
    %17 = vector.extract_strided_slice %7 {offsets = [0, 32], sizes = [8, 32], strides = [1, 1]} : vector<8x96xf32> to vector<8x32xf32>
    %18 = vector.extract_strided_slice %8 {offsets = [0, 32], sizes = [8, 32], strides = [1, 1]} : vector<8x96xf32> to vector<8x32xf32>
    %19 = arith.addf %17, %18 : vector<8x32xf32>
    %20 = arith.negf %19 : vector<8x32xf32>
    %21 = math.exp %20 : vector<8x32xf32>
    %cst_10 = arith.constant 1.000000e+00 : f32
    %22 = vector.broadcast %cst_10 : f32 to vector<8x32xf32>
    %23 = arith.addf %22, %21 : vector<8x32xf32>
    %24 = arith.divf %22, %23 : vector<8x32xf32>
    %25 = vector.extract_strided_slice %7 {offsets = [0, 64], sizes = [8, 32], strides = [1, 1]} : vector<8x96xf32> to vector<8x32xf32>
    %26 = vector.extract_strided_slice %8 {offsets = [0, 64], sizes = [8, 32], strides = [1, 1]} : vector<8x96xf32> to vector<8x32xf32>
    %27 = vector.broadcast %4 : vector<1x32xf32> to vector<8x32xf32>
    %28 = arith.addf %26, %27 : vector<8x32xf32>
    %29 = arith.mulf %16, %28 : vector<8x32xf32>
    %30 = arith.addf %25, %29 : vector<8x32xf32>
    %31 = math.tanh %30 : vector<8x32xf32>
    %cst_11 = arith.constant 1.000000e+00 : f32
    %32 = vector.broadcast %cst_11 : f32 to vector<8x32xf32>
    %33 = arith.subf %32, %24 : vector<8x32xf32>
    %34 = arith.mulf %33, %31 : vector<8x32xf32>
    %35 = arith.mulf %24, %5 : vector<8x32xf32>
    %36 = arith.addf %34, %35 : vector<8x32xf32>
    %c0_12 = arith.constant 0 : index
    %c0_13 = arith.constant 0 : index
    %c0_14 = arith.constant 0 : index
    %37 = vector.load %arg4[%c0_12, %c0_13, %c0_14] : memref<8x8x32xf32, #tpu.memory_space<vmem>>, vector<8x1x32xf32>
    %38 = vector.shape_cast %37 : vector<8x1x32xf32> to vector<8x32xf32>
    %39 = vector.shape_cast %36 : vector<8x32xf32> to vector<8x1x32xf32>
    tpu.vector_store %arg4[%c0_12, %c0_13, %c0_14], %39 {strides = array<i32>} : memref<8x8x32xf32, #tpu.memory_space<vmem>>, vector<8x1x32xf32>,
    %c0_15 = arith.constant 0 : index
    %c1 = arith.constant 1 : index
    %c0_16 = arith.constant 0 : index
    %40 = vector.load %arg1[%c0_15, %c1, %c0_16] : memref<8x8x96xf32, #tpu.memory_space<vmem>>, vector<8x1x96xf32>
    %41 = vector.shape_cast %40 : vector<8x1x96xf32> to vector<8x96xf32>
    %cst_17 = arith.constant dense<0.000000e+00> : vector<8x96xf32>
    %42 = tpu.matmul %36, %3, %cst_17 {dimension_numbers = #tpu.dot_dimension_numbers<[1], [0], [0], [1], [0, 0, 1, 1], [], []>} : vector<8x32xf32>, vector<32x96xf32>, vector<8x96xf32> -> vector<8x96xf32>
    %43 = vector.extract_strided_slice %41 {offsets = [0, 0], sizes = [8, 32], strides = [1, 1]} : vector<8x96xf32> to vector<8x32xf32>
    %44 = vector.extract_strided_slice %42 {offsets = [0, 0], sizes = [8, 32], strides = [1, 1]} : vector<8x96xf32> to vector<8x32xf32>
    %45 = arith.addf %43, %44 : vector<8x32xf32>
    %46 = arith.negf %45 : vector<8x32xf32>
    %47 = math.exp %46 : vector<8x32xf32>
    %cst_18 = arith.constant 1.000000e+00 : f32
    %48 = vector.broadcast %cst_18 : f32 to vector<8x32xf32>
    %49 = arith.addf %48, %47 : vector<8x32xf32>
    %50 = arith.divf %48, %49 : vector<8x32xf32>
    %51 = vector.extract_strided_slice %41 {offsets = [0, 32], sizes = [8, 32], strides = [1, 1]} : vector<8x96xf32> to vector<8x32xf32>
    %52 = vector.extract_strided_slice %42 {offsets = [0, 32], sizes = [8, 32], strides = [1, 1]} : vector<8x96xf32> to vector<8x32xf32>
    %53 = arith.addf %51, %52 : vector<8x32xf32>
    %54 = arith.negf %53 : vector<8x32xf32>
    %55 = math.exp %54 : vector<8x32xf32>
    %cst_19 = arith.constant 1.000000e+00 : f32
    %56 = vector.broadcast %cst_19 : f32 to vector<8x32xf32>
    %57 = arith.addf %56, %55 : vector<8x32xf32>
    %58 = arith.divf %56, %57 : vector<8x32xf32>
    %59 = vector.extract_strided_slice %41 {offsets = [0, 64], sizes = [8, 32], strides = [1, 1]} : vector<8x96xf32> to vector<8x32xf32>
    %60 = vector.extract_strided_slice %42 {offsets = [0, 64], sizes = [8, 32], strides = [1, 1]} : vector<8x96xf32> to vector<8x32xf32>
    %61 = vector.broadcast %4 : vector<1x32xf32> to vector<8x32xf32>
    %62 = arith.addf %60, %61 : vector<8x32xf32>
    %63 = arith.mulf %50, %62 : vector<8x32xf32>
    %64 = arith.addf %59, %63 : vector<8x32xf32>
    %65 = math.tanh %64 : vector<8x32xf32>
    %cst_20 = arith.constant 1.000000e+00 : f32
    %66 = vector.broadcast %cst_20 : f32 to vector<8x32xf32>
    %67 = arith.subf %66, %58 : vector<8x32xf32>
    %68 = arith.mulf %67, %65 : vector<8x32xf32>
    %69 = arith.mulf %58, %36 : vector<8x32xf32>
    %70 = arith.addf %68, %69 : vector<8x32xf32>
    %c0_21 = arith.constant 0 : index
    %c1_22 = arith.constant 1 : index
    %c0_23 = arith.constant 0 : index
    %71 = vector.load %arg4[%c0_21, %c1_22, %c0_23] : memref<8x8x32xf32, #tpu.memory_space<vmem>>, vector<8x1x32xf32>
    %72 = vector.shape_cast %71 : vector<8x1x32xf32> to vector<8x32xf32>
    %73 = vector.shape_cast %70 : vector<8x32xf32> to vector<8x1x32xf32>
    tpu.vector_store %arg4[%c0_21, %c1_22, %c0_23], %73 {strides = array<i32>} : memref<8x8x32xf32, #tpu.memory_space<vmem>>, vector<8x1x32xf32>,
    %c0_24 = arith.constant 0 : index
    %c2 = arith.constant 2 : index
    %c0_25 = arith.constant 0 : index
    %74 = vector.load %arg1[%c0_24, %c2, %c0_25] : memref<8x8x96xf32, #tpu.memory_space<vmem>>, vector<8x1x96xf32>
    %75 = vector.shape_cast %74 : vector<8x1x96xf32> to vector<8x96xf32>
    %cst_26 = arith.constant dense<0.000000e+00> : vector<8x96xf32>
    %76 = tpu.matmul %70, %3, %cst_26 {dimension_numbers = #tpu.dot_dimension_numbers<[1], [0], [0], [1], [0, 0, 1, 1], [], []>} : vector<8x32xf32>, vector<32x96xf32>, vector<8x96xf32> -> vector<8x96xf32>
    %77 = vector.extract_strided_slice %75 {offsets = [0, 0], sizes = [8, 32], strides = [1, 1]} : vector<8x96xf32> to vector<8x32xf32>
    %78 = vector.extract_strided_slice %76 {offsets = [0, 0], sizes = [8, 32], strides = [1, 1]} : vector<8x96xf32> to vector<8x32xf32>
    %79 = arith.addf %77, %78 : vector<8x32xf32>
    %80 = arith.negf %79 : vector<8x32xf32>
    %81 = math.exp %80 : vector<8x32xf32>
    %cst_27 = arith.constant 1.000000e+00 : f32
    %82 = vector.broadcast %cst_27 : f32 to vector<8x32xf32>
    %83 = arith.addf %82, %81 : vector<8x32xf32>
    %84 = arith.divf %82, %83 : vector<8x32xf32>
    %85 = vector.extract_strided_slice %75 {offsets = [0, 32], sizes = [8, 32], strides = [1, 1]} : vector<8x96xf32> to vector<8x32xf32>
    %86 = vector.extract_strided_slice %76 {offsets = [0, 32], sizes = [8, 32], strides = [1, 1]} : vector<8x96xf32> to vector<8x32xf32>
    %87 = arith.addf %85, %86 : vector<8x32xf32>
    %88 = arith.negf %87 : vector<8x32xf32>
    %89 = math.exp %88 : vector<8x32xf32>
    %cst_28 = arith.constant 1.000000e+00 : f32
    %90 = vector.broadcast %cst_28 : f32 to vector<8x32xf32>
    %91 = arith.addf %90, %89 : vector<8x32xf32>
    %92 = arith.divf %90, %91 : vector<8x32xf32>
    %93 = vector.extract_strided_slice %75 {offsets = [0, 64], sizes = [8, 32], strides = [1, 1]} : vector<8x96xf32> to vector<8x32xf32>
    %94 = vector.extract_strided_slice %76 {offsets = [0, 64], sizes = [8, 32], strides = [1, 1]} : vector<8x96xf32> to vector<8x32xf32>
    %95 = vector.broadcast %4 : vector<1x32xf32> to vector<8x32xf32>
    %96 = arith.addf %94, %95 : vector<8x32xf32>
    %97 = arith.mulf %84, %96 : vector<8x32xf32>
    %98 = arith.addf %93, %97 : vector<8x32xf32>
    %99 = math.tanh %98 : vector<8x32xf32>
    %cst_29 = arith.constant 1.000000e+00 : f32
    %100 = vector.broadcast %cst_29 : f32 to vector<8x32xf32>
    %101 = arith.subf %100, %92 : vector<8x32xf32>
    %102 = arith.mulf %101, %99 : vector<8x32xf32>
    %103 = arith.mulf %92, %70 : vector<8x32xf32>
    %104 = arith.addf %102, %103 : vector<8x32xf32>
    %c0_30 = arith.constant 0 : index
    %c2_31 = arith.constant 2 : index
    %c0_32 = arith.constant 0 : index
    %105 = vector.load %arg4[%c0_30, %c2_31, %c0_32] : memref<8x8x32xf32, #tpu.memory_space<vmem>>, vector<8x1x32xf32>
    %106 = vector.shape_cast %105 : vector<8x1x32xf32> to vector<8x32xf32>
    %107 = vector.shape_cast %104 : vector<8x32xf32> to vector<8x1x32xf32>
    tpu.vector_store %arg4[%c0_30, %c2_31, %c0_32], %107 {strides = array<i32>} : memref<8x8x32xf32, #tpu.memory_space<vmem>>, vector<8x1x32xf32>,
    %c0_33 = arith.constant 0 : index
    %c3 = arith.constant 3 : index
    %c0_34 = arith.constant 0 : index
    %108 = vector.load %arg1[%c0_33, %c3, %c0_34] : memref<8x8x96xf32, #tpu.memory_space<vmem>>, vector<8x1x96xf32>
    %109 = vector.shape_cast %108 : vector<8x1x96xf32> to vector<8x96xf32>
    %cst_35 = arith.constant dense<0.000000e+00> : vector<8x96xf32>
    %110 = tpu.matmul %104, %3, %cst_35 {dimension_numbers = #tpu.dot_dimension_numbers<[1], [0], [0], [1], [0, 0, 1, 1], [], []>} : vector<8x32xf32>, vector<32x96xf32>, vector<8x96xf32> -> vector<8x96xf32>
    %111 = vector.extract_strided_slice %109 {offsets = [0, 0], sizes = [8, 32], strides = [1, 1]} : vector<8x96xf32> to vector<8x32xf32>
    %112 = vector.extract_strided_slice %110 {offsets = [0, 0], sizes = [8, 32], strides = [1, 1]} : vector<8x96xf32> to vector<8x32xf32>
    %113 = arith.addf %111, %112 : vector<8x32xf32>
    %114 = arith.negf %113 : vector<8x32xf32>
    %115 = math.exp %114 : vector<8x32xf32>
    %cst_36 = arith.constant 1.000000e+00 : f32
    %116 = vector.broadcast %cst_36 : f32 to vector<8x32xf32>
    %117 = arith.addf %116, %115 : vector<8x32xf32>
    %118 = arith.divf %116, %117 : vector<8x32xf32>
    %119 = vector.extract_strided_slice %109 {offsets = [0, 32], sizes = [8, 32], strides = [1, 1]} : vector<8x96xf32> to vector<8x32xf32>
    %120 = vector.extract_strided_slice %110 {offsets = [0, 32], sizes = [8, 32], strides = [1, 1]} : vector<8x96xf32> to vector<8x32xf32>
    %121 = arith.addf %119, %120 : vector<8x32xf32>
    %122 = arith.negf %121 : vector<8x32xf32>
    %123 = math.exp %122 : vector<8x32xf32>
    %cst_37 = arith.constant 1.000000e+00 : f32
    %124 = vector.broadcast %cst_37 : f32 to vector<8x32xf32>
    %125 = arith.addf %124, %123 : vector<8x32xf32>
    %126 = arith.divf %124, %125 : vector<8x32xf32>
    %127 = vector.extract_strided_slice %109 {offsets = [0, 64], sizes = [8, 32], strides = [1, 1]} : vector<8x96xf32> to vector<8x32xf32>
    %128 = vector.extract_strided_slice %110 {offsets = [0, 64], sizes = [8, 32], strides = [1, 1]} : vector<8x96xf32> to vector<8x32xf32>
    %129 = vector.broadcast %4 : vector<1x32xf32> to vector<8x32xf32>
    %130 = arith.addf %128, %129 : vector<8x32xf32>
    %131 = arith.mulf %118, %130 : vector<8x32xf32>
    %132 = arith.addf %127, %131 : vector<8x32xf32>
    %133 = math.tanh %132 : vector<8x32xf32>
    %cst_38 = arith.constant 1.000000e+00 : f32
    %134 = vector.broadcast %cst_38 : f32 to vector<8x32xf32>
    %135 = arith.subf %134, %126 : vector<8x32xf32>
    %136 = arith.mulf %135, %133 : vector<8x32xf32>
    %137 = arith.mulf %126, %104 : vector<8x32xf32>
    %138 = arith.addf %136, %137 : vector<8x32xf32>
    %c0_39 = arith.constant 0 : index
    %c3_40 = arith.constant 3 : index
    %c0_41 = arith.constant 0 : index
    %139 = vector.load %arg4[%c0_39, %c3_40, %c0_41] : memref<8x8x32xf32, #tpu.memory_space<vmem>>, vector<8x1x32xf32>
    %140 = vector.shape_cast %139 : vector<8x1x32xf32> to vector<8x32xf32>
    %141 = vector.shape_cast %138 : vector<8x32xf32> to vector<8x1x32xf32>
    tpu.vector_store %arg4[%c0_39, %c3_40, %c0_41], %141 {strides = array<i32>} : memref<8x8x32xf32, #tpu.memory_space<vmem>>, vector<8x1x32xf32>,
    %c0_42 = arith.constant 0 : index
    %c4 = arith.constant 4 : index
    %c0_43 = arith.constant 0 : index
    %142 = vector.load %arg1[%c0_42, %c4, %c0_43] : memref<8x8x96xf32, #tpu.memory_space<vmem>>, vector<8x1x96xf32>
    %143 = vector.shape_cast %142 : vector<8x1x96xf32> to vector<8x96xf32>
    %cst_44 = arith.constant dense<0.000000e+00> : vector<8x96xf32>
    %144 = tpu.matmul %138, %3, %cst_44 {dimension_numbers = #tpu.dot_dimension_numbers<[1], [0], [0], [1], [0, 0, 1, 1], [], []>} : vector<8x32xf32>, vector<32x96xf32>, vector<8x96xf32> -> vector<8x96xf32>
    %145 = vector.extract_strided_slice %143 {offsets = [0, 0], sizes = [8, 32], strides = [1, 1]} : vector<8x96xf32> to vector<8x32xf32>
    %146 = vector.extract_strided_slice %144 {offsets = [0, 0], sizes = [8, 32], strides = [1, 1]} : vector<8x96xf32> to vector<8x32xf32>
    %147 = arith.addf %145, %146 : vector<8x32xf32>
    %148 = arith.negf %147 : vector<8x32xf32>
    %149 = math.exp %148 : vector<8x32xf32>
    %cst_45 = arith.constant 1.000000e+00 : f32
    %150 = vector.broadcast %cst_45 : f32 to vector<8x32xf32>
    %151 = arith.addf %150, %149 : vector<8x32xf32>
    %152 = arith.divf %150, %151 : vector<8x32xf32>
    %153 = vector.extract_strided_slice %143 {offsets = [0, 32], sizes = [8, 32], strides = [1, 1]} : vector<8x96xf32> to vector<8x32xf32>
    %154 = vector.extract_strided_slice %144 {offsets = [0, 32], sizes = [8, 32], strides = [1, 1]} : vector<8x96xf32> to vector<8x32xf32>
    %155 = arith.addf %153, %154 : vector<8x32xf32>
    %156 = arith.negf %155 : vector<8x32xf32>
    %157 = math.exp %156 : vector<8x32xf32>
    %cst_46 = arith.constant 1.000000e+00 : f32
    %158 = vector.broadcast %cst_46 : f32 to vector<8x32xf32>
    %159 = arith.addf %158, %157 : vector<8x32xf32>
    %160 = arith.divf %158, %159 : vector<8x32xf32>
    %161 = vector.extract_strided_slice %143 {offsets = [0, 64], sizes = [8, 32], strides = [1, 1]} : vector<8x96xf32> to vector<8x32xf32>
    %162 = vector.extract_strided_slice %144 {offsets = [0, 64], sizes = [8, 32], strides = [1, 1]} : vector<8x96xf32> to vector<8x32xf32>
    %163 = vector.broadcast %4 : vector<1x32xf32> to vector<8x32xf32>
    %164 = arith.addf %162, %163 : vector<8x32xf32>
    %165 = arith.mulf %152, %164 : vector<8x32xf32>
    %166 = arith.addf %161, %165 : vector<8x32xf32>
    %167 = math.tanh %166 : vector<8x32xf32>
    %cst_47 = arith.constant 1.000000e+00 : f32
    %168 = vector.broadcast %cst_47 : f32 to vector<8x32xf32>
    %169 = arith.subf %168, %160 : vector<8x32xf32>
    %170 = arith.mulf %169, %167 : vector<8x32xf32>
    %171 = arith.mulf %160, %138 : vector<8x32xf32>
    %172 = arith.addf %170, %171 : vector<8x32xf32>
    %c0_48 = arith.constant 0 : index
    %c4_49 = arith.constant 4 : index
    %c0_50 = arith.constant 0 : index
    %173 = vector.load %arg4[%c0_48, %c4_49, %c0_50] : memref<8x8x32xf32, #tpu.memory_space<vmem>>, vector<8x1x32xf32>
    %174 = vector.shape_cast %173 : vector<8x1x32xf32> to vector<8x32xf32>
    %175 = vector.shape_cast %172 : vector<8x32xf32> to vector<8x1x32xf32>
    tpu.vector_store %arg4[%c0_48, %c4_49, %c0_50], %175 {strides = array<i32>} : memref<8x8x32xf32, #tpu.memory_space<vmem>>, vector<8x1x32xf32>,
    %c0_51 = arith.constant 0 : index
    %c5 = arith.constant 5 : index
    %c0_52 = arith.constant 0 : index
    %176 = vector.load %arg1[%c0_51, %c5, %c0_52] : memref<8x8x96xf32, #tpu.memory_space<vmem>>, vector<8x1x96xf32>
    %177 = vector.shape_cast %176 : vector<8x1x96xf32> to vector<8x96xf32>
    %cst_53 = arith.constant dense<0.000000e+00> : vector<8x96xf32>
    %178 = tpu.matmul %172, %3, %cst_53 {dimension_numbers = #tpu.dot_dimension_numbers<[1], [0], [0], [1], [0, 0, 1, 1], [], []>} : vector<8x32xf32>, vector<32x96xf32>, vector<8x96xf32> -> vector<8x96xf32>
    %179 = vector.extract_strided_slice %177 {offsets = [0, 0], sizes = [8, 32], strides = [1, 1]} : vector<8x96xf32> to vector<8x32xf32>
    %180 = vector.extract_strided_slice %178 {offsets = [0, 0], sizes = [8, 32], strides = [1, 1]} : vector<8x96xf32> to vector<8x32xf32>
    %181 = arith.addf %179, %180 : vector<8x32xf32>
    %182 = arith.negf %181 : vector<8x32xf32>
    %183 = math.exp %182 : vector<8x32xf32>
    %cst_54 = arith.constant 1.000000e+00 : f32
    %184 = vector.broadcast %cst_54 : f32 to vector<8x32xf32>
    %185 = arith.addf %184, %183 : vector<8x32xf32>
    %186 = arith.divf %184, %185 : vector<8x32xf32>
    %187 = vector.extract_strided_slice %177 {offsets = [0, 32], sizes = [8, 32], strides = [1, 1]} : vector<8x96xf32> to vector<8x32xf32>
    %188 = vector.extract_strided_slice %178 {offsets = [0, 32], sizes = [8, 32], strides = [1, 1]} : vector<8x96xf32> to vector<8x32xf32>
    %189 = arith.addf %187, %188 : vector<8x32xf32>
    %190 = arith.negf %189 : vector<8x32xf32>
    %191 = math.exp %190 : vector<8x32xf32>
    %cst_55 = arith.constant 1.000000e+00 : f32
    %192 = vector.broadcast %cst_55 : f32 to vector<8x32xf32>
    %193 = arith.addf %192, %191 : vector<8x32xf32>
    %194 = arith.divf %192, %193 : vector<8x32xf32>
    %195 = vector.extract_strided_slice %177 {offsets = [0, 64], sizes = [8, 32], strides = [1, 1]} : vector<8x96xf32> to vector<8x32xf32>
    %196 = vector.extract_strided_slice %178 {offsets = [0, 64], sizes = [8, 32], strides = [1, 1]} : vector<8x96xf32> to vector<8x32xf32>
    %197 = vector.broadcast %4 : vector<1x32xf32> to vector<8x32xf32>
    %198 = arith.addf %196, %197 : vector<8x32xf32>
    %199 = arith.mulf %186, %198 : vector<8x32xf32>
    %200 = arith.addf %195, %199 : vector<8x32xf32>
    %201 = math.tanh %200 : vector<8x32xf32>
    %cst_56 = arith.constant 1.000000e+00 : f32
    %202 = vector.broadcast %cst_56 : f32 to vector<8x32xf32>
    %203 = arith.subf %202, %194 : vector<8x32xf32>
    %204 = arith.mulf %203, %201 : vector<8x32xf32>
    %205 = arith.mulf %194, %172 : vector<8x32xf32>
    %206 = arith.addf %204, %205 : vector<8x32xf32>
    %c0_57 = arith.constant 0 : index
    %c5_58 = arith.constant 5 : index
    %c0_59 = arith.constant 0 : index
    %207 = vector.load %arg4[%c0_57, %c5_58, %c0_59] : memref<8x8x32xf32, #tpu.memory_space<vmem>>, vector<8x1x32xf32>
    %208 = vector.shape_cast %207 : vector<8x1x32xf32> to vector<8x32xf32>
    %209 = vector.shape_cast %206 : vector<8x32xf32> to vector<8x1x32xf32>
    tpu.vector_store %arg4[%c0_57, %c5_58, %c0_59], %209 {strides = array<i32>} : memref<8x8x32xf32, #tpu.memory_space<vmem>>, vector<8x1x32xf32>,
    %c0_60 = arith.constant 0 : index
    %c6 = arith.constant 6 : index
    %c0_61 = arith.constant 0 : index
    %210 = vector.load %arg1[%c0_60, %c6, %c0_61] : memref<8x8x96xf32, #tpu.memory_space<vmem>>, vector<8x1x96xf32>
    %211 = vector.shape_cast %210 : vector<8x1x96xf32> to vector<8x96xf32>
    %cst_62 = arith.constant dense<0.000000e+00> : vector<8x96xf32>
    %212 = tpu.matmul %206, %3, %cst_62 {dimension_numbers = #tpu.dot_dimension_numbers<[1], [0], [0], [1], [0, 0, 1, 1], [], []>} : vector<8x32xf32>, vector<32x96xf32>, vector<8x96xf32> -> vector<8x96xf32>
    %213 = vector.extract_strided_slice %211 {offsets = [0, 0], sizes = [8, 32], strides = [1, 1]} : vector<8x96xf32> to vector<8x32xf32>
    %214 = vector.extract_strided_slice %212 {offsets = [0, 0], sizes = [8, 32], strides = [1, 1]} : vector<8x96xf32> to vector<8x32xf32>
    %215 = arith.addf %213, %214 : vector<8x32xf32>
    %216 = arith.negf %215 : vector<8x32xf32>
    %217 = math.exp %216 : vector<8x32xf32>
    %cst_63 = arith.constant 1.000000e+00 : f32
    %218 = vector.broadcast %cst_63 : f32 to vector<8x32xf32>
    %219 = arith.addf %218, %217 : vector<8x32xf32>
    %220 = arith.divf %218, %219 : vector<8x32xf32>
    %221 = vector.extract_strided_slice %211 {offsets = [0, 32], sizes = [8, 32], strides = [1, 1]} : vector<8x96xf32> to vector<8x32xf32>
    %222 = vector.extract_strided_slice %212 {offsets = [0, 32], sizes = [8, 32], strides = [1, 1]} : vector<8x96xf32> to vector<8x32xf32>
    %223 = arith.addf %221, %222 : vector<8x32xf32>
    %224 = arith.negf %223 : vector<8x32xf32>
    %225 = math.exp %224 : vector<8x32xf32>
    %cst_64 = arith.constant 1.000000e+00 : f32
    %226 = vector.broadcast %cst_64 : f32 to vector<8x32xf32>
    %227 = arith.addf %226, %225 : vector<8x32xf32>
    %228 = arith.divf %226, %227 : vector<8x32xf32>
    %229 = vector.extract_strided_slice %211 {offsets = [0, 64], sizes = [8, 32], strides = [1, 1]} : vector<8x96xf32> to vector<8x32xf32>
    %230 = vector.extract_strided_slice %212 {offsets = [0, 64], sizes = [8, 32], strides = [1, 1]} : vector<8x96xf32> to vector<8x32xf32>
    %231 = vector.broadcast %4 : vector<1x32xf32> to vector<8x32xf32>
    %232 = arith.addf %230, %231 : vector<8x32xf32>
    %233 = arith.mulf %220, %232 : vector<8x32xf32>
    %234 = arith.addf %229, %233 : vector<8x32xf32>
    %235 = math.tanh %234 : vector<8x32xf32>
    %cst_65 = arith.constant 1.000000e+00 : f32
    %236 = vector.broadcast %cst_65 : f32 to vector<8x32xf32>
    %237 = arith.subf %236, %228 : vector<8x32xf32>
    %238 = arith.mulf %237, %235 : vector<8x32xf32>
    %239 = arith.mulf %228, %206 : vector<8x32xf32>
    %240 = arith.addf %238, %239 : vector<8x32xf32>
    %c0_66 = arith.constant 0 : index
    %c6_67 = arith.constant 6 : index
    %c0_68 = arith.constant 0 : index
    %241 = vector.load %arg4[%c0_66, %c6_67, %c0_68] : memref<8x8x32xf32, #tpu.memory_space<vmem>>, vector<8x1x32xf32>
    %242 = vector.shape_cast %241 : vector<8x1x32xf32> to vector<8x32xf32>
    %243 = vector.shape_cast %240 : vector<8x32xf32> to vector<8x1x32xf32>
    tpu.vector_store %arg4[%c0_66, %c6_67, %c0_68], %243 {strides = array<i32>} : memref<8x8x32xf32, #tpu.memory_space<vmem>>, vector<8x1x32xf32>,
    %c0_69 = arith.constant 0 : index
    %c7 = arith.constant 7 : index
    %c0_70 = arith.constant 0 : index
    %244 = vector.load %arg1[%c0_69, %c7, %c0_70] : memref<8x8x96xf32, #tpu.memory_space<vmem>>, vector<8x1x96xf32>
    %245 = vector.shape_cast %244 : vector<8x1x96xf32> to vector<8x96xf32>
    %cst_71 = arith.constant dense<0.000000e+00> : vector<8x96xf32>
    %246 = tpu.matmul %240, %3, %cst_71 {dimension_numbers = #tpu.dot_dimension_numbers<[1], [0], [0], [1], [0, 0, 1, 1], [], []>} : vector<8x32xf32>, vector<32x96xf32>, vector<8x96xf32> -> vector<8x96xf32>
    %247 = vector.extract_strided_slice %245 {offsets = [0, 0], sizes = [8, 32], strides = [1, 1]} : vector<8x96xf32> to vector<8x32xf32>
    %248 = vector.extract_strided_slice %246 {offsets = [0, 0], sizes = [8, 32], strides = [1, 1]} : vector<8x96xf32> to vector<8x32xf32>
    %249 = arith.addf %247, %248 : vector<8x32xf32>
    %250 = arith.negf %249 : vector<8x32xf32>
    %251 = math.exp %250 : vector<8x32xf32>
    %cst_72 = arith.constant 1.000000e+00 : f32
    %252 = vector.broadcast %cst_72 : f32 to vector<8x32xf32>
    %253 = arith.addf %252, %251 : vector<8x32xf32>
    %254 = arith.divf %252, %253 : vector<8x32xf32>
    %255 = vector.extract_strided_slice %245 {offsets = [0, 32], sizes = [8, 32], strides = [1, 1]} : vector<8x96xf32> to vector<8x32xf32>
    %256 = vector.extract_strided_slice %246 {offsets = [0, 32], sizes = [8, 32], strides = [1, 1]} : vector<8x96xf32> to vector<8x32xf32>
    %257 = arith.addf %255, %256 : vector<8x32xf32>
    %258 = arith.negf %257 : vector<8x32xf32>
    %259 = math.exp %258 : vector<8x32xf32>
    %cst_73 = arith.constant 1.000000e+00 : f32
    %260 = vector.broadcast %cst_73 : f32 to vector<8x32xf32>
    %261 = arith.addf %260, %259 : vector<8x32xf32>
    %262 = arith.divf %260, %261 : vector<8x32xf32>
    %263 = vector.extract_strided_slice %245 {offsets = [0, 64], sizes = [8, 32], strides = [1, 1]} : vector<8x96xf32> to vector<8x32xf32>
    %264 = vector.extract_strided_slice %246 {offsets = [0, 64], sizes = [8, 32], strides = [1, 1]} : vector<8x96xf32> to vector<8x32xf32>
    %265 = vector.broadcast %4 : vector<1x32xf32> to vector<8x32xf32>
    %266 = arith.addf %264, %265 : vector<8x32xf32>
    %267 = arith.mulf %254, %266 : vector<8x32xf32>
    %268 = arith.addf %263, %267 : vector<8x32xf32>
    %269 = math.tanh %268 : vector<8x32xf32>
    %cst_74 = arith.constant 1.000000e+00 : f32
    %270 = vector.broadcast %cst_74 : f32 to vector<8x32xf32>
    %271 = arith.subf %270, %262 : vector<8x32xf32>
    %272 = arith.mulf %271, %269 : vector<8x32xf32>
    %273 = arith.mulf %262, %240 : vector<8x32xf32>
    %274 = arith.addf %272, %273 : vector<8x32xf32>
    %c0_75 = arith.constant 0 : index
    %c7_76 = arith.constant 7 : index
    %c0_77 = arith.constant 0 : index
    %275 = vector.load %arg4[%c0_75, %c7_76, %c0_77] : memref<8x8x32xf32, #tpu.memory_space<vmem>>, vector<8x1x32xf32>
    %276 = vector.shape_cast %275 : vector<8x1x32xf32> to vector<8x32xf32>
    %277 = vector.shape_cast %274 : vector<8x32xf32> to vector<8x1x32xf32>
    tpu.vector_store %arg4[%c0_75, %c7_76, %c0_77], %277 {strides = array<i32>} : memref<8x8x32xf32, #tpu.memory_space<vmem>>, vector<8x1x32xf32>,
    %c0_78 = arith.constant 0 : index
    %c0_79 = arith.constant 0 : index
    %278 = vector.load %arg5[%c0_78, %c0_79] : memref<8x32xf32, #tpu.memory_space<vmem>>, vector<8x32xf32>
    tpu.vector_store %arg5[%c0_78, %c0_79], %274 {strides = array<i32>} : memref<8x32xf32, #tpu.memory_space<vmem>>, vector<8x32xf32>,
    return
  }
  func.func @transform_0(%arg0: i32) -> (i32, i32, i32) {
    %c0_i32 = arith.constant 0 : i32
    %c0_i32_0 = arith.constant 0 : i32
    %c0_i32_1 = arith.constant 0 : i32
    return %c0_i32, %arg0, %c0_i32_0 : i32, i32, i32
  }
  func.func @transform_1(%arg0: i32) -> (i32, i32) {
    %c0_i32 = arith.constant 0 : i32
    %c0_i32_0 = arith.constant 0 : i32
    %c0_i32_1 = arith.constant 0 : i32
    return %c0_i32, %c0_i32_0 : i32, i32
  }
  func.func @transform_2(%arg0: i32) -> (i32, i32) {
    %c0_i32 = arith.constant 0 : i32
    %c0_i32_0 = arith.constant 0 : i32
    %c0_i32_1 = arith.constant 0 : i32
    return %c0_i32, %c0_i32_0 : i32, i32
  }
  func.func @transform_3(%arg0: i32) -> (i32, i32, i32) {
    %c0_i32 = arith.constant 0 : i32
    %c0_i32_0 = arith.constant 0 : i32
    %c0_i32_1 = arith.constant 0 : i32
    return %c0_i32, %arg0, %c0_i32_0 : i32, i32, i32
  }
}

</mosaic_0001>

<llo_original>
// kernel: tpu_custom_call.1
$region0: #{tpu_custom_call.1}
  #allocation0 [shape = 'u32[]', space=smem, size = 0x4, offset = 0x4, fixed_abs, tag = 'smem constant byte address 0x4 - core index']
  #allocation1 [shape = 'u32[144,128]{1,0:T(1,128)}', space=vmem, size = 0x12000, scoped, tag = 'internal scratch']
  #allocation2 [shape = 'f32[8,32]{1,0:T(8,128)}', space=vmem, size = 0x1000, scoped, tag = 'scratch operand']
  %s0 = inlined_call_operand.hbm [shape: f32[8,8,96], index: 0, kind: input, shape index: {}]
  %s1 = inlined_call_operand.hbm [shape: f32[32,96], index: 1, kind: input, shape index: {}]
  %s2 = inlined_call_operand.vmem [shape: f32[1,32], index: 2, kind: input, shape index: {}]
  %s3 = inlined_call_operand.hbm [shape: f32[8,8,32], index: 3, kind: output, shape index: {}]
  %s4 = sld [smem:[#allocation0]]
  $region34: #{tpu_custom_call.1} parent=0
    _
  %s6 = ssub.s32 1, %s4
  %s7 = scalar_select 0, %s6, %s4
  $region1: #{tpu_custom_call.1} parent=0
    #allocation3 [shape = 'u8[32768]{0}', space=vmem, size = 0x8000, scoped, tag = 'input window, operand 0, single buffered']
    #allocation4 [shape = 's32[1]{0}', space=sflag, size = 0x4, scoped, tag = 'scoped memory for tpu_custom_call.1']
    #allocation5 [shape = 's32[1]{0}', space=sflag, size = 0x4, scoped, tag = 'scoped memory for tpu_custom_call.1']
    #allocation6 [shape = 'u8[16384]{0}', space=vmem, size = 0x4000, scoped, tag = 'input window, operand 1, single buffered']
    #allocation7 [shape = 's32[1]{0}', space=sflag, size = 0x4, scoped, tag = 'scoped memory for tpu_custom_call.1']
    #allocation8 [shape = 'u8[32768]{0}', space=vmem, size = 0x8000, scoped, tag = 'output window, operand 0, single buffered']
    %8 = vsyncpa [#allocation4], 0
    %9 = vsyncpa [#allocation7], 0
    %10 = vsyncpa [#allocation5], 0
    // Predicated region
    $region2: #{tpu_custom_call.1} parent=1 // pred_check
      _
    $region3: #{tpu_custom_call.1} parent=1 // pred_check_branch
      %12 = sbr.rel (0) target = $region5
    $region4: #{tpu_custom_call.1} parent=1 // pred_region
      %s14 = ssub.s32 1024, 1024
      %15 = vsyncadd [#allocation4], %s14
      %s16 = sshll.u32 [#allocation3], 4
      %s17 = int_to_ptr.vmem [resolvable:$true] %s16
      %22 = dma.hbm_to_vmem [thread:$0]  %s0, 1024, %s17, [#allocation4], 128, 128, 8
    $region5: #{tpu_custom_call.1} parent=1 // pred_fallthru
      _
    // Predicated region
    $region6: #{tpu_custom_call.1} parent=1 // pred_check
      _
    $region7: #{tpu_custom_call.1} parent=1 // pred_check_branch
      %24 = sbr.rel (0) target = $region9
    $region8: #{tpu_custom_call.1} parent=1 // pred_region
      %s26 = ssub.s32 512, 512
      %27 = vsyncadd [#allocation7], %s26
      %s28 = sshll.u32 [#allocation6], 4
      %s29 = int_to_ptr.vmem [resolvable:$true] %s28
      %34 = dma.hbm_to_vmem [thread:$0]  %s1, 512, %s29, [#allocation7], 128, 128, 8
    $region9: #{tpu_custom_call.1} parent=1 // pred_fallthru
      _
    // Predicated region
    $region10: #{tpu_custom_call.1} parent=1 // pred_check
      _
    $region11: #{tpu_custom_call.1} parent=1 // pred_check_branch
      %36 = sbr.rel (0) target = $region13
    $region12: #{tpu_custom_call.1} parent=1 // pred_region
      _
    $region13: #{tpu_custom_call.1} parent=1 // pred_fallthru
      _
    // Predicated region
    $region14: #{tpu_custom_call.1} parent=1 // pred_check
      _
    $region15: #{tpu_custom_call.1} parent=1 // pred_check_branch
      %38 = sbr.rel (0) target = $region17
    $region16: #{tpu_custom_call.1} parent=1 // pred_region
      %39 = dma.done [#allocation4], 1024
    $region17: #{tpu_custom_call.1} parent=1 // pred_fallthru
      _
    // Predicated region
    $region18: #{tpu_custom_call.1} parent=1 // pred_check
      _
    $region19: #{tpu_custom_call.1} parent=1 // pred_check_branch
      %41 = sbr.rel (0) target = $region21
    $region20: #{tpu_custom_call.1} parent=1 // pred_region
      %42 = dma.done [#allocation7], 512
    $region21: #{tpu_custom_call.1} parent=1 // pred_fallthru
      _
    %p43 = scmp.eq.s32.totalorder 0, 0
    // Predicated region
    $region22: #{tpu_custom_call.1} parent=1 // pred_check
      %p44 = pneg %p43
    $region23: #{tpu_custom_call.1} parent=1 // pred_check_branch
      %46 = sbr.rel (%p44) target = $region25
    $region24: #{tpu_custom_call.1} parent=1 // pred_region
      %vm47 = vcmask 261120
      %48 = vst.msk [vmem:[#allocation2] sm:$0xff] %vm47, 0.0
    $region25: #{tpu_custom_call.1} parent=1 // pred_fallthru
      _
    %v49 = vld [vmem:[#allocation6] sm:$0xff]
    %v50 = vld [vmem:[#allocation6 + $0x8] sm:$0xff]
    %v51 = vld [vmem:[#allocation6 + $0x10] sm:$0xff]
    %v52 = vld [vmem:[#allocation6 + $0x18] sm:$0xff]
    %v53 = vld [vmem:[%s2] sm:$0x1]
    %v54 = vld [vmem:[#allocation2] sm:$0xff]
    %v55 = vld [vmem:[#allocation3] sm:$0x1]
    %v56 = vld [vmem:[#allocation3 + $0x8] sm:$0x1]
    %v57 = vld [vmem:[#allocation3 + $0x10] sm:$0x1]
    %v58 = vld [vmem:[#allocation3 + $0x18] sm:$0x1]
    %v59 = vld [vmem:[#allocation3 + $0x20] sm:$0x1]
    %v60 = vld [vmem:[#allocation3 + $0x28] sm:$0x1]
    %v61 = vld [vmem:[#allocation3 + $0x30] sm:$0x1]
    %v62 = vld [vmem:[#allocation3 + $0x38] sm:$0x1]
    %vm63 = vcmask 261120
    %v65 = vsel %vm63, %v54, 0
    %67 = vmatprep.subr.mxu0 0.0
    %68 = vmatpush1.msra.mxu0 0.0
    %69 = vmatprep.subr.mxu0 0.0
    %70 = vmatpush1.msra.mxu0 0.0
    %71 = vmatprep.subr.mxu0 0.0
    %72 = vmatpush1.msra.mxu0 0.0
    %73 = vmatprep.subr.mxu0 0.0
    %74 = vmatpush1.msra.mxu0 0.0
    %75 = vmatprep.subr.mxu0 0.0
    %76 = vmatpush1.msra.mxu0 0.0
    %77 = vmatprep.subr.mxu0 0.0
    %78 = vmatpush1.msra.mxu0 0.0
    %79 = vmatprep.subr.mxu0 0.0
    %80 = vmatpush1.msra.mxu0 0.0
    %81 = vmatprep.subr.mxu0 0.0
    %82 = vmatpush1.msra.mxu0 0.0
    %83 = vmatprep.subr.mxu0 0.0
    %84 = vmatpush1.msra.mxu0 0.0
    %85 = vmatprep.subr.mxu0 0.0
    %86 = vmatpush1.msra.mxu0 0.0
    %87 = vmatprep.subr.mxu0 0.0
    %88 = vmatpush1.msra.mxu0 0.0
    %89 = vmatprep.subr.mxu0 0.0
    %90 = vmatpush1.msra.mxu0 0.0
    %91 = vmatprep.subr.mxu0 0.0
    %92 = vmatpush1.msra.mxu0 %v52
    %93 = vmatprep.subr.mxu0 0.0
    %94 = vmatpush1.msra.mxu0 %v51
    %95 = vmatprep.subr.mxu0 0.0
    %96 = vmatpush1.msra.mxu0 %v50
    %97 = vmatprep.subr.mxu0 0.0
    %98 = vmatpush1.msra.mxu0 %v49
    %99 = vmatprep.subr.mxu0 0.0
    %100 = vmatpush2.msra.mxu0 0.0
    %101 = vmatprep.subr.mxu0 0.0
    %102 = vmatpush2.msra.mxu0 0.0
    %103 = vmatprep.subr.mxu0 0.0
    %104 = vmatpush2.msra.mxu0 0.0
    %105 = vmatprep.subr.mxu0 0.0
    %106 = vmatpush2.msra.mxu0 0.0
    %107 = vmatprep.subr.mxu0 0.0
    %108 = vmatpush2.msra.mxu0 0.0
    %109 = vmatprep.subr.mxu0 0.0
    %110 = vmatpush2.msra.mxu0 0.0
    %111 = vmatprep.subr.mxu0 0.0
    %112 = vmatpush2.msra.mxu0 0.0
    %113 = vmatprep.subr.mxu0 0.0
    %114 = vmatpush2.msra.mxu0 0.0
    %115 = vmatprep.subr.mxu0 0.0
    %116 = vmatpush2.msra.mxu0 0.0
    %117 = vmatprep.subr.mxu0 0.0
    %118 = vmatpush2.msra.mxu0 0.0
    %119 = vmatprep.subr.mxu0 0.0
    %120 = vmatpush2.msra.mxu0 0.0
    %121 = vmatprep.subr.mxu0 0.0
    %122 = vmatpush2.msra.mxu0 0.0
    %123 = vmatprep.subr.mxu0 0.0
    %124 = vmatpush2.msra.mxu0 0.0
    %125 = vmatprep.subr.mxu0 0.0
    %126 = vmatpush2.msra.mxu0 0.0
    %127 = vmatprep.subr.mxu0 0.0
    %128 = vmatpush2.msra.mxu0 0.0
    %129 = vmatprep.subr.mxu0 0.0
    %130 = vmatpush2.msra.mxu0 0.0
    %131 = vmatprep.mubr.f32.mxu0 0.0
    %132 = vmatmul.mubr.f32.gmra.mxu0 %v65
    %v133 = vpop.f32.mrf.mxu0
    %v134 = vadd.f32 0.0, %v133
    %v135 = vpop.f32.mrf.mxu0
    %136 = vdwg.mxu0
    %v138 = vrot.slane %v134, 1
    %v139 = vrot.slane %v134, 2
    %v140 = vrot.slane %v134, 3
    %v141 = vrot.slane %v134, 4
    %v142 = vrot.slane %v134, 5
    %v143 = vrot.slane %v134, 6
    %v144 = vrot.slane %v134, 7
    %v153 = vadd.f32 %v55, %v134
    %v154 = vadd.f32 %v56, %v138
    %v155 = vadd.f32 %v57, %v139
    %v156 = vadd.f32 %v58, %v140
    %v157 = vadd.f32 %v59, %v141
    %v158 = vadd.f32 %v60, %v142
    %v159 = vadd.f32 %v61, %v143
    %v160 = vadd.f32 %v62, %v144
    %v161 = vxor.u32 %v153, 2147483648
    %v162 = vxor.u32 %v154, 2147483648
    %v163 = vxor.u32 %v155, 2147483648
    %v164 = vxor.u32 %v156, 2147483648
    %v165 = vxor.u32 %v157, 2147483648
    %v166 = vxor.u32 %v158, 2147483648
    %v167 = vxor.u32 %v159, 2147483648
    %v168 = vxor.u32 %v160, 2147483648
    %v169 = vmul.f32 %v161, 1.442695
    %v170 = vpow.pop %v169
    %v171 = vmul.f32 %v162, 1.442695
    %v172 = vpow.pop %v171
    %v173 = vmul.f32 %v163, 1.442695
    %v174 = vpow.pop %v173
    %v175 = vmul.f32 %v164, 1.442695
    %v176 = vpow.pop %v175
    %v177 = vmul.f32 %v165, 1.442695
    %v178 = vpow.pop %v177
    %v179 = vmul.f32 %v166, 1.442695
    %v180 = vpow.pop %v179
    %v181 = vmul.f32 %v167, 1.442695
    %v182 = vpow.pop %v181
    %v183 = vmul.f32 %v168, 1.442695
    %v184 = vpow.pop %v183
    %v185 = vadd.f32 %v170, 1.0
    %v186 = vadd.f32 %v172, 1.0
    %v187 = vadd.f32 %v174, 1.0
    %v188 = vadd.f32 %v176, 1.0
    %v189 = vadd.f32 %v178, 1.0
    %v190 = vadd.f32 %v180, 1.0
    %v191 = vadd.f32 %v182, 1.0
    %v192 = vadd.f32 %v184, 1.0
    %v193 = vrcp.pop %v185
    %v194 = vmul.f32 1.0, %v193
    %v195 = vrcp.pop %v186
    %v196 = vmul.f32 1.0, %v195
    %v197 = vrcp.pop %v187
    %v198 = vmul.f32 1.0, %v197
    %v199 = vrcp.pop %v188
    %v200 = vmul.f32 1.0, %v199
    %v201 = vrcp.pop %v189
    %v202 = vmul.f32 1.0, %v201
    %v203 = vrcp.pop %v190
    %v204 = vmul.f32 1.0, %v203
    %v205 = vrcp.pop %v191
    %v206 = vmul.f32 1.0, %v205
    %v207 = vrcp.pop %v192
    %v208 = vmul.f32 1.0, %v207
    %v210 = vlaneseq
    %v211 = vshrl.u32 %v210, 7
    %v212 = vsub.s32 0, %v211
    %v213 = vrot.slane %v53, %v212
    %214 = vrot.lane.b32.xlu0 %v213, 64
    %v215 = vpop.permute.xlu0 %214
    %v217 = vadd.f32 %v134, %v215
    %v219 = vrot.slane %v217, 1
    %v220 = vrot.slane %v217, 2
    %v221 = vrot.slane %v217, 3
    %v222 = vrot.slane %v217, 4
    %v223 = vrot.slane %v217, 5
    %v224 = vrot.slane %v217, 6
    %v225 = vrot.slane %v217, 7
    %226 = vrot.lane.b32.xlu0 %v217, 64
    %v227 = vpop.permute.xlu0 %226
    %228 = vrot.lane.b32.xlu0 %v219, 64
    %v229 = vpop.permute.xlu0 %228
    %230 = vrot.lane.b32.xlu0 %v220, 64
    %v231 = vpop.permute.xlu0 %230
    %232 = vrot.lane.b32.xlu0 %v221, 64
    %v233 = vpop.permute.xlu0 %232
    %234 = vrot.lane.b32.xlu0 %v222, 64
    %v235 = vpop.permute.xlu0 %234
    %236 = vrot.lane.b32.xlu0 %v223, 64
    %v237 = vpop.permute.xlu0 %236
    %238 = vrot.lane.b32.xlu0 %v224, 64
    %v239 = vpop.permute.xlu0 %238
    %240 = vrot.lane.b32.xlu0 %v225, 64
    %v241 = vpop.permute.xlu0 %240
    %v250 = vmul.f32 %v194, %v227
    %v251 = vmul.f32 %v196, %v229
    %v252 = vmul.f32 %v198, %v231
    %v253 = vmul.f32 %v200, %v233
    %v254 = vmul.f32 %v202, %v235
    %v255 = vmul.f32 %v204, %v237
    %v256 = vmul.f32 %v206, %v239
    %v257 = vmul.f32 %v208, %v241
    %266 = vrot.lane.b32.xlu0 %v250, 64
    %v267 = vpop.permute.xlu0 %266
    %268 = vrot.lane.b32.xlu0 %v251, 64
    %v269 = vpop.permute.xlu0 %268
    %270 = vrot.lane.b32.xlu0 %v252, 64
    %v271 = vpop.permute.xlu0 %270
    %272 = vrot.lane.b32.xlu0 %v253, 64
    %v273 = vpop.permute.xlu0 %272
    %274 = vrot.lane.b32.xlu0 %v254, 64
    %v275 = vpop.permute.xlu0 %274
    %276 = vrot.lane.b32.xlu0 %v255, 64
    %v277 = vpop.permute.xlu0 %276
    %278 = vrot.lane.b32.xlu0 %v256, 64
    %v279 = vpop.permute.xlu0 %278
    %280 = vrot.lane.b32.xlu0 %v257, 64
    %v281 = vpop.permute.xlu0 %280
    %v290 = vadd.f32 %v55, %v267
    %v291 = vadd.f32 %v56, %v269
    %v292 = vadd.f32 %v57, %v271
    %v293 = vadd.f32 %v58, %v273
    %v294 = vadd.f32 %v59, %v275
    %v295 = vadd.f32 %v60, %v277
    %v296 = vadd.f32 %v61, %v279
    %v297 = vadd.f32 %v62, %v281
    %v298 = vtanh.pop %v290
    %v299 = vtanh.pop %v291
    %v300 = vtanh.pop %v292
    %v301 = vtanh.pop %v293
    %v302 = vtanh.pop %v294
    %v303 = vtanh.pop %v295
    %v304 = vtanh.pop %v296
    %v305 = vtanh.pop %v297
    %v306 = vsub.f32 1.0, %v194
    %v307 = vsub.f32 1.0, %v196
    %v308 = vsub.f32 1.0, %v198
    %v309 = vsub.f32 1.0, %v200
    %v310 = vsub.f32 1.0, %v202
    %v311 = vsub.f32 1.0, %v204
    %v312 = vsub.f32 1.0, %v206
    %v313 = vsub.f32 1.0, %v208
    %322 = vrot.lane.b32.xlu0 %v298, 96
    %v323 = vpop.permute.xlu0 %322
    %324 = vrot.lane.b32.xlu0 %v299, 96
    %v325 = vpop.permute.xlu0 %324
    %326 = vrot.lane.b32.xlu0 %v300, 96
    %v327 = vpop.permute.xlu0 %326
    %328 = vrot.lane.b32.xlu0 %v301, 96
    %v329 = vpop.permute.xlu0 %328
    %330 = vrot.lane.b32.xlu0 %v302, 96
    %v331 = vpop.permute.xlu0 %330
    %332 = vrot.lane.b32.xlu0 %v303, 96
    %v333 = vpop.permute.xlu0 %332
    %334 = vrot.lane.b32.xlu0 %v304, 96
    %v335 = vpop.permute.xlu0 %334
    %336 = vrot.lane.b32.xlu0 %v305, 96
    %v337 = vpop.permute.xlu0 %336
    %v346 = vmul.f32 %v306, %v323
    %v347 = vmul.f32 %v307, %v325
    %v348 = vmul.f32 %v308, %v327
    %v349 = vmul.f32 %v309, %v329
    %v350 = vmul.f32 %v310, %v331
    %v351 = vmul.f32 %v311, %v333
    %v352 = vmul.f32 %v312, %v335
    %v353 = vmul.f32 %v313, %v337
    %v354 = vrot.slane %v54, 1
    %v355 = vrot.slane %v54, 2
    %v356 = vrot.slane %v54, 3
    %v357 = vrot.slane %v54, 4
    %v358 = vrot.slane %v54, 5
    %v359 = vrot.slane %v54, 6
    %v360 = vrot.slane %v54, 7
    %361 = vrot.lane.b32.xlu0 %v54, 32
    %v362 = vpop.permute.xlu0 %361
    %363 = vrot.lane.b32.xlu0 %v354, 32
    %v364 = vpop.permute.xlu0 %363
    %365 = vrot.lane.b32.xlu0 %v355, 32
    %v366 = vpop.permute.xlu0 %365
    %367 = vrot.lane.b32.xlu0 %v356, 32
    %v368 = vpop.permute.xlu0 %367
    %369 = vrot.lane.b32.xlu0 %v357, 32
    %v370 = vpop.permute.xlu0 %369
    %371 = vrot.lane.b32.xlu0 %v358, 32
    %v372 = vpop.permute.xlu0 %371
    %373 = vrot.lane.b32.xlu0 %v359, 32
    %v374 = vpop.permute.xlu0 %373
    %375 = vrot.lane.b32.xlu0 %v360, 32
    %v376 = vpop.permute.xlu0 %375
    %v385 = vmul.f32 %v194, %v362
    %v386 = vmul.f32 %v196, %v364
    %v387 = vmul.f32 %v198, %v366
    %v388 = vmul.f32 %v200, %v368
    %v389 = vmul.f32 %v202, %v370
    %v390 = vmul.f32 %v204, %v372
    %v391 = vmul.f32 %v206, %v374
    %v392 = vmul.f32 %v208, %v376
    %v393 = vadd.f32 %v346, %v385
    %v394 = vadd.f32 %v347, %v386
    %v395 = vadd.f32 %v348, %v387
    %v396 = vadd.f32 %v349, %v388
    %v397 = vadd.f32 %v350, %v389
    %v398 = vadd.f32 %v351, %v390
    %v399 = vadd.f32 %v352, %v391
    %v400 = vadd.f32 %v353, %v392
    %409 = vrot.lane.b32.xlu0 %v393, 96
    %v410 = vpop.permute.xlu0 %409
    %411 = vrot.lane.b32.xlu0 %v394, 96
    %v412 = vpop.permute.xlu0 %411
    %413 = vrot.lane.b32.xlu0 %v395, 96
    %v414 = vpop.permute.xlu0 %413
    %415 = vrot.lane.b32.xlu0 %v396, 96
    %v416 = vpop.permute.xlu0 %415
    %417 = vrot.lane.b32.xlu0 %v397, 96
    %v418 = vpop.permute.xlu0 %417
    %419 = vrot.lane.b32.xlu0 %v398, 96
    %v420 = vpop.permute.xlu0 %419
    %421 = vrot.lane.b32.xlu0 %v399, 96
    %v422 = vpop.permute.xlu0 %421
    %423 = vrot.lane.b32.xlu0 %v400, 96
    %v424 = vpop.permute.xlu0 %423
    %vm433 = vcmask 253952
    %434 = vst.msk [vmem:[#allocation8] sm:$0x1] %vm433, %v410
    %435 = vst.msk [vmem:[#allocation8 + $0x8] sm:$0x1] %vm433, %v412
    %436 = vst.msk [vmem:[#allocation8 + $0x10] sm:$0x1] %vm433, %v414
    %437 = vst.msk [vmem:[#allocation8 + $0x18] sm:$0x1] %vm433, %v416
    %438 = vst.msk [vmem:[#allocation8 + $0x20] sm:$0x1] %vm433, %v418
    %439 = vst.msk [vmem:[#allocation8 + $0x28] sm:$0x1] %vm433, %v420
    %440 = vst.msk [vmem:[#allocation8 + $0x30] sm:$0x1] %vm433, %v422
    %441 = vst.msk [vmem:[#allocation8 + $0x38] sm:$0x1] %vm433, %v424
    %v442 = vld [vmem:[#allocation3 + $0x1] sm:$0x1]
    %v443 = vld [vmem:[#allocation3 + $0x9] sm:$0x1]
    %v444 = vld [vmem:[#allocation3 + $0x11] sm:$0x1]
    %v445 = vld [vmem:[#allocation3 + $0x19] sm:$0x1]
    %v446 = vld [vmem:[#allocation3 + $0x21] sm:$0x1]
    %v447 = vld [vmem:[#allocation3 + $0x29] sm:$0x1]
    %v448 = vld [vmem:[#allocation3 + $0x31] sm:$0x1]
    %v449 = vld [vmem:[#allocation3 + $0x39] sm:$0x1]
    %v450 = vrot.slane %v394, 7
    %vm451 = vcmask 1041409
    %v452 = vsel %vm451, %v450, %v393
    %v453 = vrot.slane %v395, 6
    %vm454 = vcmask 1042434
    %v455 = vsel %vm454, %v453, %v452
    %v456 = vrot.slane %v396, 5
    %vm457 = vcmask 1043459
    %v458 = vsel %vm457, %v456, %v455
    %v459 = vrot.slane %v397, 4
    %vm460 = vcmask 1044484
    %v461 = vsel %vm460, %v459, %v458
    %v462 = vrot.slane %v398, 3
    %vm463 = vcmask 1045509
    %v464 = vsel %vm463, %v462, %v461
    %v465 = vrot.slane %v399, 2
    %vm466 = vcmask 1046534
    %v467 = vsel %vm466, %v465, %v464
    %v468 = vrot.slane %v400, 1
    %vm469 = vcmask 1047559
    %v470 = vsel %vm469, %v468, %v467
    %471 = vrot.lane.b32.xlu0 %v470, 96
    %v472 = vpop.permute.xlu0 %471
    %v473 = vsel %vm63, %v472, 0
    %475 = vmatprep.subr.mxu0 0.0
    %476 = vmatpush1.msra.mxu0 0.0
    %477 = vmatprep.subr.mxu0 0.0
    %478 = vmatpush1.msra.mxu0 0.0
    %479 = vmatprep.subr.mxu0 0.0
    %480 = vmatpush1.msra.mxu0 0.0
    %481 = vmatprep.subr.mxu0 0.0
    %482 = vmatpush1.msra.mxu0 0.0
    %483 = vmatprep.subr.mxu0 0.0
    %484 = vmatpush1.msra.mxu0 0.0
    %485 = vmatprep.subr.mxu0 0.0
    %486 = vmatpush1.msra.mxu0 0.0
    %487 = vmatprep.subr.mxu0 0.0
    %488 = vmatpush1.msra.mxu0 0.0
    %489 = vmatprep.subr.mxu0 0.0
    %490 = vmatpush1.msra.mxu0 0.0
    %491 = vmatprep.subr.mxu0 0.0
    %492 = vmatpush1.msra.mxu0 0.0
    %493 = vmatprep.subr.mxu0 0.0
    %494 = vmatpush1.msra.mxu0 0.0
    %495 = vmatprep.subr.mxu0 0.0
    %496 = vmatpush1.msra.mxu0 0.0
    %497 = vmatprep.subr.mxu0 0.0
    %498 = vmatpush1.msra.mxu0 0.0
    %499 = vmatprep.subr.mxu0 0.0
    %500 = vmatpush1.msra.mxu0 %v52
    %501 = vmatprep.subr.mxu0 0.0
    %502 = vmatpush1.msra.mxu0 %v51
    %503 = vmatprep.subr.mxu0 0.0
    %504 = vmatpush1.msra.mxu0 %v50
    %505 = vmatprep.subr.mxu0 0.0
    %506 = vmatpush1.msra.mxu0 %v49
    %507 = vmatprep.subr.mxu0 0.0
    %508 = vmatpush2.msra.mxu0 0.0
    %509 = vmatprep.subr.mxu0 0.0
    %510 = vmatpush2.msra.mxu0 0.0
    %511 = vmatprep.subr.mxu0 0.0
    %512 = vmatpush2.msra.mxu0 0.0
    %513 = vmatprep.subr.mxu0 0.0
    %514 = vmatpush2.msra.mxu0 0.0
    %515 = vmatprep.subr.mxu0 0.0
    %516 = vmatpush2.msra.mxu0 0.0
    %517 = vmatprep.subr.mxu0 0.0
    %518 = vmatpush2.msra.mxu0 0.0
    %519 = vmatprep.subr.mxu0 0.0
    %520 = vmatpush2.msra.mxu0 0.0
    %521 = vmatprep.subr.mxu0 0.0
    %522 = vmatpush2.msra.mxu0 0.0
    %523 = vmatprep.subr.mxu0 0.0
    %524 = vmatpush2.msra.mxu0 0.0
    %525 = vmatprep.subr.mxu0 0.0
    %526 = vmatpush2.msra.mxu0 0.0
    %527 = vmatprep.subr.mxu0 0.0
    %528 = vmatpush2.msra.mxu0 0.0
    %529 = vmatprep.subr.mxu0 0.0
    %530 = vmatpush2.msra.mxu0 0.0
    %531 = vmatprep.subr.mxu0 0.0
    %532 = vmatpush2.msra.mxu0 0.0
    %533 = vmatprep.subr.mxu0 0.0
    %534 = vmatpush2.msra.mxu0 0.0
    %535 = vmatprep.subr.mxu0 0.0
    %536 = vmatpush2.msra.mxu0 0.0
    %537 = vmatprep.subr.mxu0 0.0
    %538 = vmatpush2.msra.mxu0 0.0
    %539 = vmatprep.mubr.f32.mxu0 0.0
    %540 = vmatmul.mubr.f32.gmra.mxu0 %v473
    %v541 = vpop.f32.mrf.mxu0
    %v542 = vadd.f32 0.0, %v541
    %v543 = vpop.f32.mrf.mxu0
    %544 = vdwg.mxu0
    %v546 = vrot.slane %v542, 1
    %v547 = vrot.slane %v542, 2
    %v548 = vrot.slane %v542, 3
    %v549 = vrot.slane %v542, 4
    %v550 = vrot.slane %v542, 5
    %v551 = vrot.slane %v542, 6
    %v552 = vrot.slane %v542, 7
    %v561 = vadd.f32 %v442, %v542
    %v562 = vadd.f32 %v443, %v546
    %v563 = vadd.f32 %v444, %v547
    %v564 = vadd.f32 %v445, %v548
    %v565 = vadd.f32 %v446, %v549
    %v566 = vadd.f32 %v447, %v550
    %v567 = vadd.f32 %v448, %v551
    %v568 = vadd.f32 %v449, %v552
    %v569 = vxor.u32 %v561, 2147483648
    %v570 = vxor.u32 %v562, 2147483648
    %v571 = vxor.u32 %v563, 2147483648
    %v572 = vxor.u32 %v564, 2147483648
    %v573 = vxor.u32 %v565, 2147483648
    %v574 = vxor.u32 %v566, 2147483648
    %v575 = vxor.u32 %v567, 2147483648
    %v576 = vxor.u32 %v568, 2147483648
    %v577 = vmul.f32 %v569, 1.442695
    %v578 = vpow.pop %v577
    %v579 = vmul.f32 %v570, 1.442695
    %v580 = vpow.pop %v579
    %v581 = vmul.f32 %v571, 1.442695
    %v582 = vpow.pop %v581
    %v583 = vmul.f32 %v572, 1.442695
    %v584 = vpow.pop %v583
    %v585 = vmul.f32 %v573, 1.442695
    %v586 = vpow.pop %v585
    %v587 = vmul.f32 %v574, 1.442695
    %v588 = vpow.pop %v587
    %v589 = vmul.f32 %v575, 1.442695
    %v590 = vpow.pop %v589
    %v591 = vmul.f32 %v576, 1.442695
    %v592 = vpow.pop %v591
    %v593 = vadd.f32 %v578, 1.0
    %v594 = vadd.f32 %v580, 1.0
    %v595 = vadd.f32 %v582, 1.0
    %v596 = vadd.f32 %v584, 1.0
    %v597 = vadd.f32 %v586, 1.0
    %v598 = vadd.f32 %v588, 1.0
    %v599 = vadd.f32 %v590, 1.0
    %v600 = vadd.f32 %v592, 1.0
    %v601 = vrcp.pop %v593
    %v602 = vmul.f32 1.0, %v601
    %v603 = vrcp.pop %v594
    %v604 = vmul.f32 1.0, %v603
    %v605 = vrcp.pop %v595
    %v606 = vmul.f32 1.0, %v605
    %v607 = vrcp.pop %v596
    %v608 = vmul.f32 1.0, %v607
    %v609 = vrcp.pop %v597
    %v610 = vmul.f32 1.0, %v609
    %v611 = vrcp.pop %v598
    %v612 = vmul.f32 1.0, %v611
    %v613 = vrcp.pop %v599
    %v614 = vmul.f32 1.0, %v613
    %v615 = vrcp.pop %v600
    %v616 = vmul.f32 1.0, %v615
    %v617 = vadd.f32 %v542, %v215
    %v619 = vrot.slane %v617, 1
    %v620 = vrot.slane %v617, 2
    %v621 = vrot.slane %v617, 3
    %v622 = vrot.slane %v617, 4
    %v623 = vrot.slane %v617, 5
    %v624 = vrot.slane %v617, 6
    %v625 = vrot.slane %v617, 7
    %626 = vrot.lane.b32.xlu0 %v617, 64
    %v627 = vpop.permute.xlu0 %626
    %628 = vrot.lane.b32.xlu0 %v619, 64
    %v629 = vpop.permute.xlu0 %628
    %630 = vrot.lane.b32.xlu0 %v620, 64
    %v631 = vpop.permute.xlu0 %630
    %632 = vrot.lane.b32.xlu0 %v621, 64
    %v633 = vpop.permute.xlu0 %632
    %634 = vrot.lane.b32.xlu0 %v622, 64
    %v635 = vpop.permute.xlu0 %634
    %636 = vrot.lane.b32.xlu0 %v623, 64
    %v637 = vpop.permute.xlu0 %636
    %638 = vrot.lane.b32.xlu0 %v624, 64
    %v639 = vpop.permute.xlu0 %638
    %640 = vrot.lane.b32.xlu0 %v625, 64
    %v641 = vpop.permute.xlu0 %640
    %v650 = vmul.f32 %v602, %v627
    %v651 = vmul.f32 %v604, %v629
    %v652 = vmul.f32 %v606, %v631
    %v653 = vmul.f32 %v608, %v633
    %v654 = vmul.f32 %v610, %v635
    %v655 = vmul.f32 %v612, %v637
    %v656 = vmul.f32 %v614, %v639
    %v657 = vmul.f32 %v616, %v641
    %666 = vrot.lane.b32.xlu0 %v650, 64
    %v667 = vpop.permute.xlu0 %666
    %668 = vrot.lane.b32.xlu0 %v651, 64
    %v669 = vpop.permute.xlu0 %668
    %670 = vrot.lane.b32.xlu0 %v652, 64
    %v671 = vpop.permute.xlu0 %670
    %672 = vrot.lane.b32.xlu0 %v653, 64
    %v673 = vpop.permute.xlu0 %672
    %674 = vrot.lane.b32.xlu0 %v654, 64
    %v675 = vpop.permute.xlu0 %674
    %676 = vrot.lane.b32.xlu0 %v655, 64
    %v677 = vpop.permute.xlu0 %676
    %678 = vrot.lane.b32.xlu0 %v656, 64
    %v679 = vpop.permute.xlu0 %678
    %680 = vrot.lane.b32.xlu0 %v657, 64
    %v681 = vpop.permute.xlu0 %680
    %v690 = vadd.f32 %v442, %v667
    %v691 = vadd.f32 %v443, %v669
    %v692 = vadd.f32 %v444, %v671
    %v693 = vadd.f32 %v445, %v673
    %v694 = vadd.f32 %v446, %v675
    %v695 = vadd.f32 %v447, %v677
    %v696 = vadd.f32 %v448, %v679
    %v697 = vadd.f32 %v449, %v681
    %v698 = vtanh.pop %v690
    %v699 = vtanh.pop %v691
    %v700 = vtanh.pop %v692
    %v701 = vtanh.pop %v693
    %v702 = vtanh.pop %v694
    %v703 = vtanh.pop %v695
    %v704 = vtanh.pop %v696
    %v705 = vtanh.pop %v697
    %v706 = vsub.f32 1.0, %v602
    %v707 = vsub.f32 1.0, %v604
    %v708 = vsub.f32 1.0, %v606
    %v709 = vsub.f32 1.0, %v608
    %v710 = vsub.f32 1.0, %v610
    %v711 = vsub.f32 1.0, %v612
    %v712 = vsub.f32 1.0, %v614
    %v713 = vsub.f32 1.0, %v616
    %722 = vrot.lane.b32.xlu0 %v698, 96
    %v723 = vpop.permute.xlu0 %722
    %724 = vrot.lane.b32.xlu0 %v699, 96
    %v725 = vpop.permute.xlu0 %724
    %726 = vrot.lane.b32.xlu0 %v700, 96
    %v727 = vpop.permute.xlu0 %726
    %728 = vrot.lane.b32.xlu0 %v701, 96
    %v729 = vpop.permute.xlu0 %728
    %730 = vrot.lane.b32.xlu0 %v702, 96
    %v731 = vpop.permute.xlu0 %730
    %732 = vrot.lane.b32.xlu0 %v703, 96
    %v733 = vpop.permute.xlu0 %732
    %734 = vrot.lane.b32.xlu0 %v704, 96
    %v735 = vpop.permute.xlu0 %734
    %736 = vrot.lane.b32.xlu0 %v705, 96
    %v737 = vpop.permute.xlu0 %736
    %v746 = vmul.f32 %v706, %v723
    %v747 = vmul.f32 %v707, %v725
    %v748 = vmul.f32 %v708, %v727
    %v749 = vmul.f32 %v709, %v729
    %v750 = vmul.f32 %v710, %v731
    %v751 = vmul.f32 %v711, %v733
    %v752 = vmul.f32 %v712, %v735
    %v753 = vmul.f32 %v713, %v737
    %v754 = vmul.f32 %v602, %v393
    %v755 = vmul.f32 %v604, %v394
    %v756 = vmul.f32 %v606, %v395
    %v757 = vmul.f32 %v608, %v396
    %v758 = vmul.f32 %v610, %v397
    %v759 = vmul.f32 %v612, %v398
    %v760 = vmul.f32 %v614, %v399
    %v761 = vmul.f32 %v616, %v400
    %v762 = vadd.f32 %v746, %v754
    %v763 = vadd.f32 %v747, %v755
    %v764 = vadd.f32 %v748, %v756
    %v765 = vadd.f32 %v749, %v757
    %v766 = vadd.f32 %v750, %v758
    %v767 = vadd.f32 %v751, %v759
    %v768 = vadd.f32 %v752, %v760
    %v769 = vadd.f32 %v753, %v761
    %778 = vrot.lane.b32.xlu0 %v762, 96
    %v779 = vpop.permute.xlu0 %778
    %780 = vrot.lane.b32.xlu0 %v763, 96
    %v781 = vpop.permute.xlu0 %780
    %782 = vrot.lane.b32.xlu0 %v764, 96
    %v783 = vpop.permute.xlu0 %782
    %784 = vrot.lane.b32.xlu0 %v765, 96
    %v785 = vpop.permute.xlu0 %784
    %786 = vrot.lane.b32.xlu0 %v766, 96
    %v787 = vpop.permute.xlu0 %786
    %788 = vrot.lane.b32.xlu0 %v767, 96
    %v789 = vpop.permute.xlu0 %788
    %790 = vrot.lane.b32.xlu0 %v768, 96
    %v791 = vpop.permute.xlu0 %790
    %792 = vrot.lane.b32.xlu0 %v769, 96
    %v793 = vpop.permute.xlu0 %792
    %802 = vst.msk [vmem:[#allocation8 + $0x1] sm:$0x1] %vm433, %v779
    %803 = vst.msk [vmem:[#allocation8 + $0x9] sm:$0x1] %vm433, %v781
    %804 = vst.msk [vmem:[#allocation8 + $0x11] sm:$0x1] %vm433, %v783
    %805 = vst.msk [vmem:[#allocation8 + $0x19] sm:$0x1] %vm433, %v785
    %806 = vst.msk [vmem:[#allocation8 + $0x21] sm:$0x1] %vm433, %v787
    %807 = vst.msk [vmem:[#allocation8 + $0x29] sm:$0x1] %vm433, %v789
    %808 = vst.msk [vmem:[#allocation8 + $0x31] sm:$0x1] %vm433, %v791
    %809 = vst.msk [vmem:[#allocation8 + $0x39] sm:$0x1] %vm433, %v793
    %v810 = vld [vmem:[#allocation3 + $0x2] sm:$0x1]
    %v811 = vld [vmem:[#allocation3 + $0xa] sm:$0x1]
    %v812 = vld [vmem:[#allocation3 + $0x12] sm:$0x1]
    %v813 = vld [vmem:[#allocation3 + $0x1a] sm:$0x1]
    %v814 = vld [vmem:[#allocation3 + $0x22] sm:$0x1]
    %v815 = vld [vmem:[#allocation3 + $0x2a] sm:$0x1]
    %v816 = vld [vmem:[#allocation3 + $0x32] sm:$0x1]
    %v817 = vld [vmem:[#allocation3 + $0x3a] sm:$0x1]
    %v818 = vrot.slane %v763, 7
    %v819 = vsel %vm451, %v818, %v762
    %v820 = vrot.slane %v764, 6
    %v821 = vsel %vm454, %v820, %v819
    %v822 = vrot.slane %v765, 5
    %v823 = vsel %vm457, %v822, %v821
    %v824 = vrot.slane %v766, 4
    %v825 = vsel %vm460, %v824, %v823
    %v826 = vrot.slane %v767, 3
    %v827 = vsel %vm463, %v826, %v825
    %v828 = vrot.slane %v768, 2
    %v829 = vsel %vm466, %v828, %v827
    %v830 = vrot.slane %v769, 1
    %v831 = vsel %vm469, %v830, %v829
    %832 = vrot.lane.b32.xlu0 %v831, 96
    %v833 = vpop.permute.xlu0 %832
    %v834 = vsel %vm63, %v833, 0
    %836 = vmatprep.subr.mxu0 0.0
    %837 = vmatpush1.msra.mxu0 0.0
    %838 = vmatprep.subr.mxu0 0.0
    %839 = vmatpush1.msra.mxu0 0.0
    %840 = vmatprep.subr.mxu0 0.0
    %841 = vmatpush1.msra.mxu0 0.0
    %842 = vmatprep.subr.mxu0 0.0
    %843 = vmatpush1.msra.mxu0 0.0
    %844 = vmatprep.subr.mxu0 0.0
    %845 = vmatpush1.msra.mxu0 0.0
    %846 = vmatprep.subr.mxu0 0.0
    %847 = vmatpush1.msra.mxu0 0.0
    %848 = vmatprep.subr.mxu0 0.0
    %849 = vmatpush1.msra.mxu0 0.0
    %850 = vmatprep.subr.mxu0 0.0
    %851 = vmatpush1.msra.mxu0 0.0
    %852 = vmatprep.subr.mxu0 0.0
    %853 = vmatpush1.msra.mxu0 0.0
    %854 = vmatprep.subr.mxu0 0.0
    %855 = vmatpush1.msra.mxu0 0.0
    %856 = vmatprep.subr.mxu0 0.0
    %857 = vmatpush1.msra.mxu0 0.0
    %858 = vmatprep.subr.mxu0 0.0
    %859 = vmatpush1.msra.mxu0 0.0
    %860 = vmatprep.subr.mxu0 0.0
    %861 = vmatpush1.msra.mxu0 %v52
    %862 = vmatprep.subr.mxu0 0.0
    %863 = vmatpush1.msra.mxu0 %v51
    %864 = vmatprep.subr.mxu0 0.0
    %865 = vmatpush1.msra.mxu0 %v50
    %866 = vmatprep.subr.mxu0 0.0
    %867 = vmatpush1.msra.mxu0 %v49
    %868 = vmatprep.subr.mxu0 0.0
    %869 = vmatpush2.msra.mxu0 0.0
    %870 = vmatprep.subr.mxu0 0.0
    %871 = vmatpush2.msra.mxu0 0.0
    %872 = vmatprep.subr.mxu0 0.0
    %873 = vmatpush2.msra.mxu0 0.0
    %874 = vmatprep.subr.mxu0 0.0
    %875 = vmatpush2.msra.mxu0 0.0
    %876 = vmatprep.subr.mxu0 0.0
    %877 = vmatpush2.msra.mxu0 0.0
    %878 = vmatprep.subr.mxu0 0.0
    %879 = vmatpush2.msra.mxu0 0.0
    %880 = vmatprep.subr.mxu0 0.0
    %881 = vmatpush2.msra.mxu0 0.0
    %882 = vmatprep.subr.mxu0 0.0
    %883 = vmatpush2.msra.mxu0 0.0
    %884 = vmatprep.subr.mxu0 0.0
    %885 = vmatpush2.msra.mxu0 0.0
    %886 = vmatprep.subr.mxu0 0.0
    %887 = vmatpush2.msra.mxu0 0.0
    %888 = vmatprep.subr.mxu0 0.0
    %889 = vmatpush2.msra.mxu0 0.0
    %890 = vmatprep.subr.mxu0 0.0
    %891 = vmatpush2.msra.mxu0 0.0
    %892 = vmatprep.subr.mxu0 0.0
    %893 = vmatpush2.msra.mxu0 0.0
    %894 = vmatprep.subr.mxu0 0.0
    %895 = vmatpush2.msra.mxu0 0.0
    %896 = vmatprep.subr.mxu0 0.0
    %897 = vmatpush2.msra.mxu0 0.0
    %898 = vmatprep.subr.mxu0 0.0
    %899 = vmatpush2.msra.mxu0 0.0
    %900 = vmatprep.mubr.f32.mxu0 0.0
    %901 = vmatmul.mubr.f32.gmra.mxu0 %v834
    %v902 = vpop.f32.mrf.mxu0
    %v903 = vadd.f32 0.0, %v902
    %v904 = vpop.f32.mrf.mxu0
    %905 = vdwg.mxu0
    %v907 = vrot.slane %v903, 1
    %v908 = vrot.slane %v903, 2
    %v909 = vrot.slane %v903, 3
    %v910 = vrot.slane %v903, 4
    %v911 = vrot.slane %v903, 5
    %v912 = vrot.slane %v903, 6
    %v913 = vrot.slane %v903, 7
    %v922 = vadd.f32 %v810, %v903
    %v923 = vadd.f32 %v811, %v907
    %v924 = vadd.f32 %v812, %v908
    %v925 = vadd.f32 %v813, %v909
    %v926 = vadd.f32 %v814, %v910
    %v927 = vadd.f32 %v815, %v911
    %v928 = vadd.f32 %v816, %v912
    %v929 = vadd.f32 %v817, %v913
    %v930 = vxor.u32 %v922, 2147483648
    %v931 = vxor.u32 %v923, 2147483648
    %v932 = vxor.u32 %v924, 2147483648
    %v933 = vxor.u32 %v925, 2147483648
    %v934 = vxor.u32 %v926, 2147483648
    %v935 = vxor.u32 %v927, 2147483648
    %v936 = vxor.u32 %v928, 2147483648
    %v937 = vxor.u32 %v929, 2147483648
    %v938 = vmul.f32 %v930, 1.442695
    %v939 = vpow.pop %v938
    %v940 = vmul.f32 %v931, 1.442695
    %v941 = vpow.pop %v940
    %v942 = vmul.f32 %v932, 1.442695
    %v943 = vpow.pop %v942
    %v944 = vmul.f32 %v933, 1.442695
    %v945 = vpow.pop %v944
    %v946 = vmul.f32 %v934, 1.442695
    %v947 = vpow.pop %v946
    %v948 = vmul.f32 %v935, 1.442695
    %v949 = vpow.pop %v948
    %v950 = vmul.f32 %v936, 1.442695
    %v951 = vpow.pop %v950
    %v952 = vmul.f32 %v937, 1.442695
    %v953 = vpow.pop %v952
    %v954 = vadd.f32 %v939, 1.0
    %v955 = vadd.f32 %v941, 1.0
    %v956 = vadd.f32 %v943, 1.0
    %v957 = vadd.f32 %v945, 1.0
    %v958 = vadd.f32 %v947, 1.0
    %v959 = vadd.f32 %v949, 1.0
    %v960 = vadd.f32 %v951, 1.0
    %v961 = vadd.f32 %v953, 1.0
    %v962 = vrcp.pop %v954
    %v963 = vmul.f32 1.0, %v962
    %v964 = vrcp.pop %v955
    %v965 = vmul.f32 1.0, %v964
    %v966 = vrcp.pop %v956
    %v967 = vmul.f32 1.0, %v966
    %v968 = vrcp.pop %v957
    %v969 = vmul.f32 1.0, %v968
    %v970 = vrcp.pop %v958
    %v971 = vmul.f32 1.0, %v970
    %v972 = vrcp.pop %v959
    %v973 = vmul.f32 1.0, %v972
    %v974 = vrcp.pop %v960
    %v975 = vmul.f32 1.0, %v974
    %v976 = vrcp.pop %v961
    %v977 = vmul.f32 1.0, %v976
    %v978 = vadd.f32 %v903, %v215
    %v980 = vrot.slane %v978, 1
    %v981 = vrot.slane %v978, 2
    %v982 = vrot.slane %v978, 3
    %v983 = vrot.slane %v978, 4
    %v984 = vrot.slane %v978, 5
    %v985 = vrot.slane %v978, 6
    %v986 = vrot.slane %v978, 7
    %987 = vrot.lane.b32.xlu0 %v978, 64
    %v988 = vpop.permute.xlu0 %987
    %989 = vrot.lane.b32.xlu0 %v980, 64
    %v990 = vpop.permute.xlu0 %989
    %991 = vrot.lane.b32.xlu0 %v981, 64
    %v992 = vpop.permute.xlu0 %991
    %993 = vrot.lane.b32.xlu0 %v982, 64
    %v994 = vpop.permute.xlu0 %993
    %995 = vrot.lane.b32.xlu0 %v983, 64
    %v996 = vpop.permute.xlu0 %995
    %997 = vrot.lane.b32.xlu0 %v984, 64
    %v998 = vpop.permute.xlu0 %997
    %999 = vrot.lane.b32.xlu0 %v985, 64
    %v1000 = vpop.permute.xlu0 %999
    %1001 = vrot.lane.b32.xlu0 %v986, 64
    %v1002 = vpop.permute.xlu0 %1001
    %v1011 = vmul.f32 %v963, %v988
    %v1012 = vmul.f32 %v965, %v990
    %v1013 = vmul.f32 %v967, %v992
    %v1014 = vmul.f32 %v969, %v994
    %v1015 = vmul.f32 %v971, %v996
    %v1016 = vmul.f32 %v973, %v998
    %v1017 = vmul.f32 %v975, %v1000
    %v1018 = vmul.f32 %v977, %v1002
    %1027 = vrot.lane.b32.xlu0 %v1011, 64
    %v1028 = vpop.permute.xlu0 %1027
    %1029 = vrot.lane.b32.xlu0 %v1012, 64
    %v1030 = vpop.permute.xlu0 %1029
    %1031 = vrot.lane.b32.xlu0 %v1013, 64
    %v1032 = vpop.permute.xlu0 %1031
    %1033 = vrot.lane.b32.xlu0 %v1014, 64
    %v1034 = vpop.permute.xlu0 %1033
    %1035 = vrot.lane.b32.xlu0 %v1015, 64
    %v1036 = vpop.permute.xlu0 %1035
    %1037 = vrot.lane.b32.xlu0 %v1016, 64
    %v1038 = vpop.permute.xlu0 %1037
    %1039 = vrot.lane.b32.xlu0 %v1017, 64
    %v1040 = vpop.permute.xlu0 %1039
    %1041 = vrot.lane.b32.xlu0 %v1018, 64
    %v1042 = vpop.permute.xlu0 %1041
    %v1051 = vadd.f32 %v810, %v1028
    %v1052 = vadd.f32 %v811, %v1030
    %v1053 = vadd.f32 %v812, %v1032
    %v1054 = vadd.f32 %v813, %v1034
    %v1055 = vadd.f32 %v814, %v1036
    %v1056 = vadd.f32 %v815, %v1038
    %v1057 = vadd.f32 %v816, %v1040
    %v1058 = vadd.f32 %v817, %v1042
    %v1059 = vtanh.pop %v1051
    %v1060 = vtanh.pop %v1052
    %v1061 = vtanh.pop %v1053
    %v1062 = vtanh.pop %v1054
    %v1063 = vtanh.pop %v1055
    %v1064 = vtanh.pop %v1056
    %v1065 = vtanh.pop %v1057
    %v1066 = vtanh.pop %v1058
    %v1067 = vsub.f32 1.0, %v963
    %v1068 = vsub.f32 1.0, %v965
    %v1069 = vsub.f32 1.0, %v967
    %v1070 = vsub.f32 1.0, %v969
    %v1071 = vsub.f32 1.0, %v971
    %v1072 = vsub.f32 1.0, %v973
    %v1073 = vsub.f32 1.0, %v975
    %v1074 = vsub.f32 1.0, %v977
    %1083 = vrot.lane.b32.xlu0 %v1059, 96
    %v1084 = vpop.permute.xlu0 %1083
    %1085 = vrot.lane.b32.xlu0 %v1060, 96
    %v1086 = vpop.permute.xlu0 %1085
    %1087 = vrot.lane.b32.xlu0 %v1061, 96
    %v1088 = vpop.permute.xlu0 %1087
    %1089 = vrot.lane.b32.xlu0 %v1062, 96
    %v1090 = vpop.permute.xlu0 %1089
    %1091 = vrot.lane.b32.xlu0 %v1063, 96
    %v1092 = vpop.permute.xlu0 %1091
    %1093 = vrot.lane.b32.xlu0 %v1064, 96
    %v1094 = vpop.permute.xlu0 %1093
    %1095 = vrot.lane.b32.xlu0 %v1065, 96
    %v1096 = vpop.permute.xlu0 %1095
    %1097 = vrot.lane.b32.xlu0 %v1066, 96
    %v1098 = vpop.permute.xlu0 %1097
    %v1107 = vmul.f32 %v1067, %v1084
    %v1108 = vmul.f32 %v1068, %v1086
    %v1109 = vmul.f32 %v1069, %v1088
    %v1110 = vmul.f32 %v1070, %v1090
    %v1111 = vmul.f32 %v1071, %v1092
    %v1112 = vmul.f32 %v1072, %v1094
    %v1113 = vmul.f32 %v1073, %v1096
    %v1114 = vmul.f32 %v1074, %v1098
    %v1115 = vmul.f32 %v963, %v762
    %v1116 = vmul.f32 %v965, %v763
    %v1117 = vmul.f32 %v967, %v764
    %v1118 = vmul.f32 %v969, %v765
    %v1119 = vmul.f32 %v971, %v766
    %v1120 = vmul.f32 %v973, %v767
    %v1121 = vmul.f32 %v975, %v768
    %v1122 = vmul.f32 %v977, %v769
    %v1123 = vadd.f32 %v1107, %v1115
    %v1124 = vadd.f32 %v1108, %v1116
    %v1125 = vadd.f32 %v1109, %v1117
    %v1126 = vadd.f32 %v1110, %v1118
    %v1127 = vadd.f32 %v1111, %v1119
    %v1128 = vadd.f32 %v1112, %v1120
    %v1129 = vadd.f32 %v1113, %v1121
    %v1130 = vadd.f32 %v1114, %v1122
    %1139 = vrot.lane.b32.xlu0 %v1123, 96
    %v1140 = vpop.permute.xlu0 %1139
    %1141 = vrot.lane.b32.xlu0 %v1124, 96
    %v1142 = vpop.permute.xlu0 %1141
    %1143 = vrot.lane.b32.xlu0 %v1125, 96
    %v1144 = vpop.permute.xlu0 %1143
    %1145 = vrot.lane.b32.xlu0 %v1126, 96
    %v1146 = vpop.permute.xlu0 %1145
    %1147 = vrot.lane.b32.xlu0 %v1127, 96
    %v1148 = vpop.permute.xlu0 %1147
    %1149 = vrot.lane.b32.xlu0 %v1128, 96
    %v1150 = vpop.permute.xlu0 %1149
    %1151 = vrot.lane.b32.xlu0 %v1129, 96
    %v1152 = vpop.permute.xlu0 %1151
    %1153 = vrot.lane.b32.xlu0 %v1130, 96
    %v1154 = vpop.permute.xlu0 %1153
    %1163 = vst.msk [vmem:[#allocation8 + $0x2] sm:$0x1] %vm433, %v1140
    %1164 = vst.msk [vmem:[#allocation8 + $0xa] sm:$0x1] %vm433, %v1142
    %1165 = vst.msk [vmem:[#allocation8 + $0x12] sm:$0x1] %vm433, %v1144
    %1166 = vst.msk [vmem:[#allocation8 + $0x1a] sm:$0x1] %vm433, %v1146
    %1167 = vst.msk [vmem:[#allocation8 + $0x22] sm:$0x1] %vm433, %v1148
    %1168 = vst.msk [vmem:[#allocation8 + $0x2a] sm:$0x1] %vm433, %v1150
    %1169 = vst.msk [vmem:[#allocation8 + $0x32] sm:$0x1] %vm433, %v1152
    %1170 = vst.msk [vmem:[#allocation8 + $0x3a] sm:$0x1] %vm433, %v1154
    %v1171 = vld [vmem:[#allocation3 + $0x3] sm:$0x1]
    %v1172 = vld [vmem:[#allocation3 + $0xb] sm:$0x1]
    %v1173 = vld [vmem:[#allocation3 + $0x13] sm:$0x1]
    %v1174 = vld [vmem:[#allocation3 + $0x1b] sm:$0x1]
    %v1175 = vld [vmem:[#allocation3 + $0x23] sm:$0x1]
    %v1176 = vld [vmem:[#allocation3 + $0x2b] sm:$0x1]
    %v1177 = vld [vmem:[#allocation3 + $0x33] sm:$0x1]
    %v1178 = vld [vmem:[#allocation3 + $0x3b] sm:$0x1]
    %v1179 = vrot.slane %v1124, 7
    %v1180 = vsel %vm451, %v1179, %v1123
    %v1181 = vrot.slane %v1125, 6
    %v1182 = vsel %vm454, %v1181, %v1180
    %v1183 = vrot.slane %v1126, 5
    %v1184 = vsel %vm457, %v1183, %v1182
    %v1185 = vrot.slane %v1127, 4
    %v1186 = vsel %vm460, %v1185, %v1184
    %v1187 = vrot.slane %v1128, 3
    %v1188 = vsel %vm463, %v1187, %v1186
    %v1189 = vrot.slane %v1129, 2
    %v1190 = vsel %vm466, %v1189, %v1188
    %v1191 = vrot.slane %v1130, 1
    %v1192 = vsel %vm469, %v1191, %v1190
    %1193 = vrot.lane.b32.xlu0 %v1192, 96
    %v1194 = vpop.permute.xlu0 %1193
    %v1195 = vsel %vm63, %v1194, 0
    %1197 = vmatprep.subr.mxu0 0.0
    %1198 = vmatpush1.msra.mxu0 0.0
    %1199 = vmatprep.subr.mxu0 0.0
    %1200 = vmatpush1.msra.mxu0 0.0
    %1201 = vmatprep.subr.mxu0 0.0
    %1202 = vmatpush1.msra.mxu0 0.0
    %1203 = vmatprep.subr.mxu0 0.0
    %1204 = vmatpush1.msra.mxu0 0.0
    %1205 = vmatprep.subr.mxu0 0.0
    %1206 = vmatpush1.msra.mxu0 0.0
    %1207 = vmatprep.subr.mxu0 0.0
    %1208 = vmatpush1.msra.mxu0 0.0
    %1209 = vmatprep.subr.mxu0 0.0
    %1210 = vmatpush1.msra.mxu0 0.0
    %1211 = vmatprep.subr.mxu0 0.0
    %1212 = vmatpush1.msra.mxu0 0.0
    %1213 = vmatprep.subr.mxu0 0.0
    %1214 = vmatpush1.msra.mxu0 0.0
    %1215 = vmatprep.subr.mxu0 0.0
    %1216 = vmatpush1.msra.mxu0 0.0
    %1217 = vmatprep.subr.mxu0 0.0
    %1218 = vmatpush1.msra.mxu0 0.0
    %1219 = vmatprep.subr.mxu0 0.0
    %1220 = vmatpush1.msra.mxu0 0.0
    %1221 = vmatprep.subr.mxu0 0.0
    %1222 = vmatpush1.msra.mxu0 %v52
    %1223 = vmatprep.subr.mxu0 0.0
    %1224 = vmatpush1.msra.mxu0 %v51
    %1225 = vmatprep.subr.mxu0 0.0
    %1226 = vmatpush1.msra.mxu0 %v50
    %1227 = vmatprep.subr.mxu0 0.0
    %1228 = vmatpush1.msra.mxu0 %v49
    %1229 = vmatprep.subr.mxu0 0.0
    %1230 = vmatpush2.msra.mxu0 0.0
    %1231 = vmatprep.subr.mxu0 0.0
    %1232 = vmatpush2.msra.mxu0 0.0
    %1233 = vmatprep.subr.mxu0 0.0
    %1234 = vmatpush2.msra.mxu0 0.0
    %1235 = vmatprep.subr.mxu0 0.0
    %1236 = vmatpush2.msra.mxu0 0.0
    %1237 = vmatprep.subr.mxu0 0.0
    %1238 = vmatpush2.msra.mxu0 0.0
    %1239 = vmatprep.subr.mxu0 0.0
    %1240 = vmatpush2.msra.mxu0 0.0
    %1241 = vmatprep.subr.mxu0 0.0
    %1242 = vmatpush2.msra.mxu0 0.0
    %1243 = vmatprep.subr.mxu0 0.0
    %1244 = vmatpush2.msra.mxu0 0.0
    %1245 = vmatprep.subr.mxu0 0.0
    %1246 = vmatpush2.msra.mxu0 0.0
    %1247 = vmatprep.subr.mxu0 0.0
    %1248 = vmatpush2.msra.mxu0 0.0
    %1249 = vmatprep.subr.mxu0 0.0
    %1250 = vmatpush2.msra.mxu0 0.0
    %1251 = vmatprep.subr.mxu0 0.0
    %1252 = vmatpush2.msra.mxu0 0.0
    %1253 = vmatprep.subr.mxu0 0.0
    %1254 = vmatpush2.msra.mxu0 0.0
    %1255 = vmatprep.subr.mxu0 0.0
    %1256 = vmatpush2.msra.mxu0 0.0
    %1257 = vmatprep.subr.mxu0 0.0
    %1258 = vmatpush2.msra.mxu0 0.0
    %1259 = vmatprep.subr.mxu0 0.0
    %1260 = vmatpush2.msra.mxu0 0.0
    %1261 = vmatprep.mubr.f32.mxu0 0.0
    %1262 = vmatmul.mubr.f32.gmra.mxu0 %v1195
    %v1263 = vpop.f32.mrf.mxu0
    %v1264 = vadd.f32 0.0, %v1263
    %v1265 = vpop.f32.mrf.mxu0
    %1266 = vdwg.mxu0
    %v1268 = vrot.slane %v1264, 1
    %v1269 = vrot.slane %v1264, 2
    %v1270 = vrot.slane %v1264, 3
    %v1271 = vrot.slane %v1264, 4
    %v1272 = vrot.slane %v1264, 5
    %v1273 = vrot.slane %v1264, 6
    %v1274 = vrot.slane %v1264, 7
    %v1283 = vadd.f32 %v1171, %v1264
    %v1284 = vadd.f32 %v1172, %v1268
    %v1285 = vadd.f32 %v1173, %v1269
    %v1286 = vadd.f32 %v1174, %v1270
    %v1287 = vadd.f32 %v1175, %v1271
    %v1288 = vadd.f32 %v1176, %v1272
    %v1289 = vadd.f32 %v1177, %v1273
    %v1290 = vadd.f32 %v1178, %v1274
    %v1291 = vxor.u32 %v1283, 2147483648
    %v1292 = vxor.u32 %v1284, 2147483648
    %v1293 = vxor.u32 %v1285, 2147483648
    %v1294 = vxor.u32 %v1286, 2147483648
    %v1295 = vxor.u32 %v1287, 2147483648
    %v1296 = vxor.u32 %v1288, 2147483648
    %v1297 = vxor.u32 %v1289, 2147483648
    %v1298 = vxor.u32 %v1290, 2147483648
    %v1299 = vmul.f32 %v1291, 1.442695
    %v1300 = vpow.pop %v1299
    %v1301 = vmul.f32 %v1292, 1.442695
    %v1302 = vpow.pop %v1301
    %v1303 = vmul.f32 %v1293, 1.442695
    %v1304 = vpow.pop %v1303
    %v1305 = vmul.f32 %v1294, 1.442695
    %v1306 = vpow.pop %v1305
    %v1307 = vmul.f32 %v1295, 1.442695
    %v1308 = vpow.pop %v1307
    %v1309 = vmul.f32 %v1296, 1.442695
    %v1310 = vpow.pop %v1309
    %v1311 = vmul.f32 %v1297, 1.442695
    %v1312 = vpow.pop %v1311
    %v1313 = vmul.f32 %v1298, 1.442695
    %v1314 = vpow.pop %v1313
    %v1315 = vadd.f32 %v1300, 1.0
    %v1316 = vadd.f32 %v1302, 1.0
    %v1317 = vadd.f32 %v1304, 1.0
    %v1318 = vadd.f32 %v1306, 1.0
    %v1319 = vadd.f32 %v1308, 1.0
    %v1320 = vadd.f32 %v1310, 1.0
    %v1321 = vadd.f32 %v1312, 1.0
    %v1322 = vadd.f32 %v1314, 1.0
    %v1323 = vrcp.pop %v1315
    %v1324 = vmul.f32 1.0, %v1323
    %v1325 = vrcp.pop %v1316
    %v1326 = vmul.f32 1.0, %v1325
    %v1327 = vrcp.pop %v1317
    %v1328 = vmul.f32 1.0, %v1327
    %v1329 = vrcp.pop %v1318
    %v1330 = vmul.f32 1.0, %v1329
    %v1331 = vrcp.pop %v1319
    %v1332 = vmul.f32 1.0, %v1331
    %v1333 = vrcp.pop %v1320
    %v1334 = vmul.f32 1.0, %v1333
    %v1335 = vrcp.pop %v1321
    %v1336 = vmul.f32 1.0, %v1335
    %v1337 = vrcp.pop %v1322
    %v1338 = vmul.f32 1.0, %v1337
    %v1339 = vadd.f32 %v1264, %v215
    %v1341 = vrot.slane %v1339, 1
    %v1342 = vrot.slane %v1339, 2
    %v1343 = vrot.slane %v1339, 3
    %v1344 = vrot.slane %v1339, 4
    %v1345 = vrot.slane %v1339, 5
    %v1346 = vrot.slane %v1339, 6
    %v1347 = vrot.slane %v1339, 7
    %1348 = vrot.lane.b32.xlu0 %v1339, 64
    %v1349 = vpop.permute.xlu0 %1348
    %1350 = vrot.lane.b32.xlu0 %v1341, 64
    %v1351 = vpop.permute.xlu0 %1350
    %1352 = vrot.lane.b32.xlu0 %v1342, 64
    %v1353 = vpop.permute.xlu0 %1352
    %1354 = vrot.lane.b32.xlu0 %v1343, 64
    %v1355 = vpop.permute.xlu0 %1354
    %1356 = vrot.lane.b32.xlu0 %v1344, 64
    %v1357 = vpop.permute.xlu0 %1356
    %1358 = vrot.lane.b32.xlu0 %v1345, 64
    %v1359 = vpop.permute.xlu0 %1358
    %1360 = vrot.lane.b32.xlu0 %v1346, 64
    %v1361 = vpop.permute.xlu0 %1360
    %1362 = vrot.lane.b32.xlu0 %v1347, 64
    %v1363 = vpop.permute.xlu0 %1362
    %v1372 = vmul.f32 %v1324, %v1349
    %v1373 = vmul.f32 %v1326, %v1351
    %v1374 = vmul.f32 %v1328, %v1353
    %v1375 = vmul.f32 %v1330, %v1355
    %v1376 = vmul.f32 %v1332, %v1357
    %v1377 = vmul.f32 %v1334, %v1359
    %v1378 = vmul.f32 %v1336, %v1361
    %v1379 = vmul.f32 %v1338, %v1363
    %1388 = vrot.lane.b32.xlu0 %v1372, 64
    %v1389 = vpop.permute.xlu0 %1388
    %1390 = vrot.lane.b32.xlu0 %v1373, 64
    %v1391 = vpop.permute.xlu0 %1390
    %1392 = vrot.lane.b32.xlu0 %v1374, 64
    %v1393 = vpop.permute.xlu0 %1392
    %1394 = vrot.lane.b32.xlu0 %v1375, 64
    %v1395 = vpop.permute.xlu0 %1394
    %1396 = vrot.lane.b32.xlu0 %v1376, 64
    %v1397 = vpop.permute.xlu0 %1396
    %1398 = vrot.lane.b32.xlu0 %v1377, 64
    %v1399 = vpop.permute.xlu0 %1398
    %1400 = vrot.lane.b32.xlu0 %v1378, 64
    %v1401 = vpop.permute.xlu0 %1400
    %1402 = vrot.lane.b32.xlu0 %v1379, 64
    %v1403 = vpop.permute.xlu0 %1402
    %v1412 = vadd.f32 %v1171, %v1389
    %v1413 = vadd.f32 %v1172, %v1391
    %v1414 = vadd.f32 %v1173, %v1393
    %v1415 = vadd.f32 %v1174, %v1395
    %v1416 = vadd.f32 %v1175, %v1397
    %v1417 = vadd.f32 %v1176, %v1399
    %v1418 = vadd.f32 %v1177, %v1401
    %v1419 = vadd.f32 %v1178, %v1403
    %v1420 = vtanh.pop %v1412
    %v1421 = vtanh.pop %v1413
    %v1422 = vtanh.pop %v1414
    %v1423 = vtanh.pop %v1415
    %v1424 = vtanh.pop %v1416
    %v1425 = vtanh.pop %v1417
    %v1426 = vtanh.pop %v1418
    %v1427 = vtanh.pop %v1419
    %v1428 = vsub.f32 1.0, %v1324
    %v1429 = vsub.f32 1.0, %v1326
    %v1430 = vsub.f32 1.0, %v1328
    %v1431 = vsub.f32 1.0, %v1330
    %v1432 = vsub.f32 1.0, %v1332
    %v1433 = vsub.f32 1.0, %v1334
    %v1434 = vsub.f32 1.0, %v1336
    %v1435 = vsub.f32 1.0, %v1338
    %1444 = vrot.lane.b32.xlu0 %v1420, 96
    %v1445 = vpop.permute.xlu0 %1444
    %1446 = vrot.lane.b32.xlu0 %v1421, 96
    %v1447 = vpop.permute.xlu0 %1446
    %1448 = vrot.lane.b32.xlu0 %v1422, 96
    %v1449 = vpop.permute.xlu0 %1448
    %1450 = vrot.lane.b32.xlu0 %v1423, 96
    %v1451 = vpop.permute.xlu0 %1450
    %1452 = vrot.lane.b32.xlu0 %v1424, 96
    %v1453 = vpop.permute.xlu0 %1452
    %1454 = vrot.lane.b32.xlu0 %v1425, 96
    %v1455 = vpop.permute.xlu0 %1454
    %1456 = vrot.lane.b32.xlu0 %v1426, 96
    %v1457 = vpop.permute.xlu0 %1456
    %1458 = vrot.lane.b32.xlu0 %v1427, 96
    %v1459 = vpop.permute.xlu0 %1458
    %v1468 = vmul.f32 %v1428, %v1445
    %v1469 = vmul.f32 %v1429, %v1447
    %v1470 = vmul.f32 %v1430, %v1449
    %v1471 = vmul.f32 %v1431, %v1451
    %v1472 = vmul.f32 %v1432, %v1453
    %v1473 = vmul.f32 %v1433, %v1455
    %v1474 = vmul.f32 %v1434, %v1457
    %v1475 = vmul.f32 %v1435, %v1459
    %v1476 = vmul.f32 %v1324, %v1123
    %v1477 = vmul.f32 %v1326, %v1124
    %v1478 = vmul.f32 %v1328, %v1125
    %v1479 = vmul.f32 %v1330, %v1126
    %v1480 = vmul.f32 %v1332, %v1127
    %v1481 = vmul.f32 %v1334, %v1128
    %v1482 = vmul.f32 %v1336, %v1129
    %v1483 = vmul.f32 %v1338, %v1130
    %v1484 = vadd.f32 %v1468, %v1476
    %v1485 = vadd.f32 %v1469, %v1477
    %v1486 = vadd.f32 %v1470, %v1478
    %v1487 = vadd.f32 %v1471, %v1479
    %v1488 = vadd.f32 %v1472, %v1480
    %v1489 = vadd.f32 %v1473, %v1481
    %v1490 = vadd.f32 %v1474, %v1482
    %v1491 = vadd.f32 %v1475, %v1483
    %1500 = vrot.lane.b32.xlu0 %v1484, 96
    %v1501 = vpop.permute.xlu0 %1500
    %1502 = vrot.lane.b32.xlu0 %v1485, 96
    %v1503 = vpop.permute.xlu0 %1502
    %1504 = vrot.lane.b32.xlu0 %v1486, 96
    %v1505 = vpop.permute.xlu0 %1504
    %1506 = vrot.lane.b32.xlu0 %v1487, 96
    %v1507 = vpop.permute.xlu0 %1506
    %1508 = vrot.lane.b32.xlu0 %v1488, 96
    %v1509 = vpop.permute.xlu0 %1508
    %1510 = vrot.lane.b32.xlu0 %v1489, 96
    %v1511 = vpop.permute.xlu0 %1510
    %1512 = vrot.lane.b32.xlu0 %v1490, 96
    %v1513 = vpop.permute.xlu0 %1512
    %1514 = vrot.lane.b32.xlu0 %v1491, 96
    %v1515 = vpop.permute.xlu0 %1514
    %1524 = vst.msk [vmem:[#allocation8 + $0x3] sm:$0x1] %vm433, %v1501
    %1525 = vst.msk [vmem:[#allocation8 + $0xb] sm:$0x1] %vm433, %v1503
    %1526 = vst.msk [vmem:[#allocation8 + $0x13] sm:$0x1] %vm433, %v1505
    %1527 = vst.msk [vmem:[#allocation8 + $0x1b] sm:$0x1] %vm433, %v1507
    %1528 = vst.msk [vmem:[#allocation8 + $0x23] sm:$0x1] %vm433, %v1509
    %1529 = vst.msk [vmem:[#allocation8 + $0x2b] sm:$0x1] %vm433, %v1511
    %1530 = vst.msk [vmem:[#allocation8 + $0x33] sm:$0x1] %vm433, %v1513
    %1531 = vst.msk [vmem:[#allocation8 + $0x3b] sm:$0x1] %vm433, %v1515
    %v1532 = vld [vmem:[#allocation3 + $0x4] sm:$0x1]
    %v1533 = vld [vmem:[#allocation3 + $0xc] sm:$0x1]
    %v1534 = vld [vmem:[#allocation3 + $0x14] sm:$0x1]
    %v1535 = vld [vmem:[#allocation3 + $0x1c] sm:$0x1]
    %v1536 = vld [vmem:[#allocation3 + $0x24] sm:$0x1]
    %v1537 = vld [vmem:[#allocation3 + $0x2c] sm:$0x1]
    %v1538 = vld [vmem:[#allocation3 + $0x34] sm:$0x1]
    %v1539 = vld [vmem:[#allocation3 + $0x3c] sm:$0x1]
    %v1540 = vrot.slane %v1485, 7
    %v1541 = vsel %vm451, %v1540, %v1484
    %v1542 = vrot.slane %v1486, 6
    %v1543 = vsel %vm454, %v1542, %v1541
    %v1544 = vrot.slane %v1487, 5
    %v1545 = vsel %vm457, %v1544, %v1543
    %v1546 = vrot.slane %v1488, 4
    %v1547 = vsel %vm460, %v1546, %v1545
    %v1548 = vrot.slane %v1489, 3
    %v1549 = vsel %vm463, %v1548, %v1547
    %v1550 = vrot.slane %v1490, 2
    %v1551 = vsel %vm466, %v1550, %v1549
    %v1552 = vrot.slane %v1491, 1
    %v1553 = vsel %vm469, %v1552, %v1551
    %1554 = vrot.lane.b32.xlu0 %v1553, 96
    %v1555 = vpop.permute.xlu0 %1554
    %v1556 = vsel %vm63, %v1555, 0
    %1558 = vmatprep.subr.mxu0 0.0
    %1559 = vmatpush1.msra.mxu0 0.0
    %1560 = vmatprep.subr.mxu0 0.0
    %1561 = vmatpush1.msra.mxu0 0.0
    %1562 = vmatprep.subr.mxu0 0.0
    %1563 = vmatpush1.msra.mxu0 0.0
    %1564 = vmatprep.subr.mxu0 0.0
    %1565 = vmatpush1.msra.mxu0 0.0
    %1566 = vmatprep.subr.mxu0 0.0
    %1567 = vmatpush1.msra.mxu0 0.0
    %1568 = vmatprep.subr.mxu0 0.0
    %1569 = vmatpush1.msra.mxu0 0.0
    %1570 = vmatprep.subr.mxu0 0.0
    %1571 = vmatpush1.msra.mxu0 0.0
    %1572 = vmatprep.subr.mxu0 0.0
    %1573 = vmatpush1.msra.mxu0 0.0
    %1574 = vmatprep.subr.mxu0 0.0
    %1575 = vmatpush1.msra.mxu0 0.0
    %1576 = vmatprep.subr.mxu0 0.0
    %1577 = vmatpush1.msra.mxu0 0.0
    %1578 = vmatprep.subr.mxu0 0.0
    %1579 = vmatpush1.msra.mxu0 0.0
    %1580 = vmatprep.subr.mxu0 0.0
    %1581 = vmatpush1.msra.mxu0 0.0
    %1582 = vmatprep.subr.mxu0 0.0
    %1583 = vmatpush1.msra.mxu0 %v52
    %1584 = vmatprep.subr.mxu0 0.0
    %1585 = vmatpush1.msra.mxu0 %v51
    %1586 = vmatprep.subr.mxu0 0.0
    %1587 = vmatpush1.msra.mxu0 %v50
    %1588 = vmatprep.subr.mxu0 0.0
    %1589 = vmatpush1.msra.mxu0 %v49
    %1590 = vmatprep.subr.mxu0 0.0
    %1591 = vmatpush2.msra.mxu0 0.0
    %1592 = vmatprep.subr.mxu0 0.0
    %1593 = vmatpush2.msra.mxu0 0.0
    %1594 = vmatprep.subr.mxu0 0.0
    %1595 = vmatpush2.msra.mxu0 0.0
    %1596 = vmatprep.subr.mxu0 0.0
    %1597 = vmatpush2.msra.mxu0 0.0
    %1598 = vmatprep.subr.mxu0 0.0
    %1599 = vmatpush2.msra.mxu0 0.0
    %1600 = vmatprep.subr.mxu0 0.0
    %1601 = vmatpush2.msra.mxu0 0.0
    %1602 = vmatprep.subr.mxu0 0.0
    %1603 = vmatpush2.msra.mxu0 0.0
    %1604 = vmatprep.subr.mxu0 0.0
    %1605 = vmatpush2.msra.mxu0 0.0
    %1606 = vmatprep.subr.mxu0 0.0
    %1607 = vmatpush2.msra.mxu0 0.0
    %1608 = vmatprep.subr.mxu0 0.0
    %1609 = vmatpush2.msra.mxu0 0.0
    %1610 = vmatprep.subr.mxu0 0.0
    %1611 = vmatpush2.msra.mxu0 0.0
    %1612 = vmatprep.subr.mxu0 0.0
    %1613 = vmatpush2.msra.mxu0 0.0
    %1614 = vmatprep.subr.mxu0 0.0
    %1615 = vmatpush2.msra.mxu0 0.0
    %1616 = vmatprep.subr.mxu0 0.0
    %1617 = vmatpush2.msra.mxu0 0.0
    %1618 = vmatprep.subr.mxu0 0.0
    %1619 = vmatpush2.msra.mxu0 0.0
    %1620 = vmatprep.subr.mxu0 0.0
    %1621 = vmatpush2.msra.mxu0 0.0
    %1622 = vmatprep.mubr.f32.mxu0 0.0
    %1623 = vmatmul.mubr.f32.gmra.mxu0 %v1556
    %v1624 = vpop.f32.mrf.mxu0
    %v1625 = vadd.f32 0.0, %v1624
    %v1626 = vpop.f32.mrf.mxu0
    %1627 = vdwg.mxu0
    %v1629 = vrot.slane %v1625, 1
    %v1630 = vrot.slane %v1625, 2
    %v1631 = vrot.slane %v1625, 3
    %v1632 = vrot.slane %v1625, 4
    %v1633 = vrot.slane %v1625, 5
    %v1634 = vrot.slane %v1625, 6
    %v1635 = vrot.slane %v1625, 7
    %v1644 = vadd.f32 %v1532, %v1625
    %v1645 = vadd.f32 %v1533, %v1629
    %v1646 = vadd.f32 %v1534, %v1630
    %v1647 = vadd.f32 %v1535, %v1631
    %v1648 = vadd.f32 %v1536, %v1632
    %v1649 = vadd.f32 %v1537, %v1633
    %v1650 = vadd.f32 %v1538, %v1634
    %v1651 = vadd.f32 %v1539, %v1635
    %v1652 = vxor.u32 %v1644, 2147483648
    %v1653 = vxor.u32 %v1645, 2147483648
    %v1654 = vxor.u32 %v1646, 2147483648
    %v1655 = vxor.u32 %v1647, 2147483648
    %v1656 = vxor.u32 %v1648, 2147483648
    %v1657 = vxor.u32 %v1649, 2147483648
    %v1658 = vxor.u32 %v1650, 2147483648
    %v1659 = vxor.u32 %v1651, 2147483648
    %v1660 = vmul.f32 %v1652, 1.442695
    %v1661 = vpow.pop %v1660
    %v1662 = vmul.f32 %v1653, 1.442695
    %v1663 = vpow.pop %v1662
    %v1664 = vmul.f32 %v1654, 1.442695
    %v1665 = vpow.pop %v1664
    %v1666 = vmul.f32 %v1655, 1.442695
    %v1667 = vpow.pop %v1666
    %v1668 = vmul.f32 %v1656, 1.442695
    %v1669 = vpow.pop %v1668
    %v1670 = vmul.f32 %v1657, 1.442695
    %v1671 = vpow.pop %v1670
    %v1672 = vmul.f32 %v1658, 1.442695
    %v1673 = vpow.pop %v1672
    %v1674 = vmul.f32 %v1659, 1.442695
    %v1675 = vpow.pop %v1674
    %v1676 = vadd.f32 %v1661, 1.0
    %v1677 = vadd.f32 %v1663, 1.0
    %v1678 = vadd.f32 %v1665, 1.0
    %v1679 = vadd.f32 %v1667, 1.0
    %v1680 = vadd.f32 %v1669, 1.0
    %v1681 = vadd.f32 %v1671, 1.0
    %v1682 = vadd.f32 %v1673, 1.0
    %v1683 = vadd.f32 %v1675, 1.0
    %v1684 = vrcp.pop %v1676
    %v1685 = vmul.f32 1.0, %v1684
    %v1686 = vrcp.pop %v1677
    %v1687 = vmul.f32 1.0, %v1686
    %v1688 = vrcp.pop %v1678
    %v1689 = vmul.f32 1.0, %v1688
    %v1690 = vrcp.pop %v1679
    %v1691 = vmul.f32 1.0, %v1690
    %v1692 = vrcp.pop %v1680
    %v1693 = vmul.f32 1.0, %v1692
    %v1694 = vrcp.pop %v1681
    %v1695 = vmul.f32 1.0, %v1694
    %v1696 = vrcp.pop %v1682
    %v1697 = vmul.f32 1.0, %v1696
    %v1698 = vrcp.pop %v1683
    %v1699 = vmul.f32 1.0, %v1698
    %v1700 = vadd.f32 %v1625, %v215
    %v1702 = vrot.slane %v1700, 1
    %v1703 = vrot.slane %v1700, 2
    %v1704 = vrot.slane %v1700, 3
    %v1705 = vrot.slane %v1700, 4
    %v1706 = vrot.slane %v1700, 5
    %v1707 = vrot.slane %v1700, 6
    %v1708 = vrot.slane %v1700, 7
    %1709 = vrot.lane.b32.xlu0 %v1700, 64
    %v1710 = vpop.permute.xlu0 %1709
    %1711 = vrot.lane.b32.xlu0 %v1702, 64
    %v1712 = vpop.permute.xlu0 %1711
    %1713 = vrot.lane.b32.xlu0 %v1703, 64
    %v1714 = vpop.permute.xlu0 %1713
    %1715 = vrot.lane.b32.xlu0 %v1704, 64
    %v1716 = vpop.permute.xlu0 %1715
    %1717 = vrot.lane.b32.xlu0 %v1705, 64
    %v1718 = vpop.permute.xlu0 %1717
    %1719 = vrot.lane.b32.xlu0 %v1706, 64
    %v1720 = vpop.permute.xlu0 %1719
    %1721 = vrot.lane.b32.xlu0 %v1707, 64
    %v1722 = vpop.permute.xlu0 %1721
    %1723 = vrot.lane.b32.xlu0 %v1708, 64
    %v1724 = vpop.permute.xlu0 %1723
    %v1733 = vmul.f32 %v1685, %v1710
    %v1734 = vmul.f32 %v1687, %v1712
    %v1735 = vmul.f32 %v1689, %v1714
    %v1736 = vmul.f32 %v1691, %v1716
    %v1737 = vmul.f32 %v1693, %v1718
    %v1738 = vmul.f32 %v1695, %v1720
    %v1739 = vmul.f32 %v1697, %v1722
    %v1740 = vmul.f32 %v1699, %v1724
    %1749 = vrot.lane.b32.xlu0 %v1733, 64
    %v1750 = vpop.permute.xlu0 %1749
    %1751 = vrot.lane.b32.xlu0 %v1734, 64
    %v1752 = vpop.permute.xlu0 %1751
    %1753 = vrot.lane.b32.xlu0 %v1735, 64
    %v1754 = vpop.permute.xlu0 %1753
    %1755 = vrot.lane.b32.xlu0 %v1736, 64
    %v1756 = vpop.permute.xlu0 %1755
    %1757 = vrot.lane.b32.xlu0 %v1737, 64
    %v1758 = vpop.permute.xlu0 %1757
    %1759 = vrot.lane.b32.xlu0 %v1738, 64
    %v1760 = vpop.permute.xlu0 %1759
    %1761 = vrot.lane.b32.xlu0 %v1739, 64
    %v1762 = vpop.permute.xlu0 %1761
    %1763 = vrot.lane.b32.xlu0 %v1740, 64
    %v1764 = vpop.permute.xlu0 %1763
    %v1773 = vadd.f32 %v1532, %v1750
    %v1774 = vadd.f32 %v1533, %v1752
    %v1775 = vadd.f32 %v1534, %v1754
    %v1776 = vadd.f32 %v1535, %v1756
    %v1777 = vadd.f32 %v1536, %v1758
    %v1778 = vadd.f32 %v1537, %v1760
    %v1779 = vadd.f32 %v1538, %v1762
    %v1780 = vadd.f32 %v1539, %v1764
    %v1781 = vtanh.pop %v1773
    %v1782 = vtanh.pop %v1774
    %v1783 = vtanh.pop %v1775
    %v1784 = vtanh.pop %v1776
    %v1785 = vtanh.pop %v1777
    %v1786 = vtanh.pop %v1778
    %v1787 = vtanh.pop %v1779
    %v1788 = vtanh.pop %v1780
    %v1789 = vsub.f32 1.0, %v1685
    %v1790 = vsub.f32 1.0, %v1687
    %v1791 = vsub.f32 1.0, %v1689
    %v1792 = vsub.f32 1.0, %v1691
    %v1793 = vsub.f32 1.0, %v1693
    %v1794 = vsub.f32 1.0, %v1695
    %v1795 = vsub.f32 1.0, %v1697
    %v1796 = vsub.f32 1.0, %v1699
    %1805 = vrot.lane.b32.xlu0 %v1781, 96
    %v1806 = vpop.permute.xlu0 %1805
    %1807 = vrot.lane.b32.xlu0 %v1782, 96
    %v1808 = vpop.permute.xlu0 %1807
    %1809 = vrot.lane.b32.xlu0 %v1783, 96
    %v1810 = vpop.permute.xlu0 %1809
    %1811 = vrot.lane.b32.xlu0 %v1784, 96
    %v1812 = vpop.permute.xlu0 %1811
    %1813 = vrot.lane.b32.xlu0 %v1785, 96
    %v1814 = vpop.permute.xlu0 %1813
    %1815 = vrot.lane.b32.xlu0 %v1786, 96
    %v1816 = vpop.permute.xlu0 %1815
    %1817 = vrot.lane.b32.xlu0 %v1787, 96
    %v1818 = vpop.permute.xlu0 %1817
    %1819 = vrot.lane.b32.xlu0 %v1788, 96
    %v1820 = vpop.permute.xlu0 %1819
    %v1829 = vmul.f32 %v1789, %v1806
    %v1830 = vmul.f32 %v1790, %v1808
    %v1831 = vmul.f32 %v1791, %v1810
    %v1832 = vmul.f32 %v1792, %v1812
    %v1833 = vmul.f32 %v1793, %v1814
    %v1834 = vmul.f32 %v1794, %v1816
    %v1835 = vmul.f32 %v1795, %v1818
    %v1836 = vmul.f32 %v1796, %v1820
    %v1837 = vmul.f32 %v1685, %v1484
    %v1838 = vmul.f32 %v1687, %v1485
    %v1839 = vmul.f32 %v1689, %v1486
    %v1840 = vmul.f32 %v1691, %v1487
    %v1841 = vmul.f32 %v1693, %v1488
    %v1842 = vmul.f32 %v1695, %v1489
    %v1843 = vmul.f32 %v1697, %v1490
    %v1844 = vmul.f32 %v1699, %v1491
    %v1845 = vadd.f32 %v1829, %v1837
    %v1846 = vadd.f32 %v1830, %v1838
    %v1847 = vadd.f32 %v1831, %v1839
    %v1848 = vadd.f32 %v1832, %v1840
    %v1849 = vadd.f32 %v1833, %v1841
    %v1850 = vadd.f32 %v1834, %v1842
    %v1851 = vadd.f32 %v1835, %v1843
    %v1852 = vadd.f32 %v1836, %v1844
    %1861 = vrot.lane.b32.xlu0 %v1845, 96
    %v1862 = vpop.permute.xlu0 %1861
    %1863 = vrot.lane.b32.xlu0 %v1846, 96
    %v1864 = vpop.permute.xlu0 %1863
    %1865 = vrot.lane.b32.xlu0 %v1847, 96
    %v1866 = vpop.permute.xlu0 %1865
    %1867 = vrot.lane.b32.xlu0 %v1848, 96
    %v1868 = vpop.permute.xlu0 %1867
    %1869 = vrot.lane.b32.xlu0 %v1849, 96
    %v1870 = vpop.permute.xlu0 %1869
    %1871 = vrot.lane.b32.xlu0 %v1850, 96
    %v1872 = vpop.permute.xlu0 %1871
    %1873 = vrot.lane.b32.xlu0 %v1851, 96
    %v1874 = vpop.permute.xlu0 %1873
    %1875 = vrot.lane.b32.xlu0 %v1852, 96
    %v1876 = vpop.permute.xlu0 %1875
    %1885 = vst.msk [vmem:[#allocation8 + $0x4] sm:$0x1] %vm433, %v1862
    %1886 = vst.msk [vmem:[#allocation8 + $0xc] sm:$0x1] %vm433, %v1864
    %1887 = vst.msk [vmem:[#allocation8 + $0x14] sm:$0x1] %vm433, %v1866
    %1888 = vst.msk [vmem:[#allocation8 + $0x1c] sm:$0x1] %vm433, %v1868
    %1889 = vst.msk [vmem:[#allocation8 + $0x24] sm:$0x1] %vm433, %v1870
    %1890 = vst.msk [vmem:[#allocation8 + $0x2c] sm:$0x1] %vm433, %v1872
    %1891 = vst.msk [vmem:[#allocation8 + $0x34] sm:$0x1] %vm433, %v1874
    %1892 = vst.msk [vmem:[#allocation8 + $0x3c] sm:$0x1] %vm433, %v1876
    %v1893 = vld [vmem:[#allocation3 + $0x5] sm:$0x1]
    %v1894 = vld [vmem:[#allocation3 + $0xd] sm:$0x1]
    %v1895 = vld [vmem:[#allocation3 + $0x15] sm:$0x1]
    %v1896 = vld [vmem:[#allocation3 + $0x1d] sm:$0x1]
    %v1897 = vld [vmem:[#allocation3 + $0x25] sm:$0x1]
    %v1898 = vld [vmem:[#allocation3 + $0x2d] sm:$0x1]
    %v1899 = vld [vmem:[#allocation3 + $0x35] sm:$0x1]
    %v1900 = vld [vmem:[#allocation3 + $0x3d] sm:$0x1]
    %v1901 = vrot.slane %v1846, 7
    %v1902 = vsel %vm451, %v1901, %v1845
    %v1903 = vrot.slane %v1847, 6
    %v1904 = vsel %vm454, %v1903, %v1902
    %v1905 = vrot.slane %v1848, 5
    %v1906 = vsel %vm457, %v1905, %v1904
    %v1907 = vrot.slane %v1849, 4
    %v1908 = vsel %vm460, %v1907, %v1906
    %v1909 = vrot.slane %v1850, 3
    %v1910 = vsel %vm463, %v1909, %v1908
    %v1911 = vrot.slane %v1851, 2
    %v1912 = vsel %vm466, %v1911, %v1910
    %v1913 = vrot.slane %v1852, 1
    %v1914 = vsel %vm469, %v1913, %v1912
    %1915 = vrot.lane.b32.xlu0 %v1914, 96
    %v1916 = vpop.permute.xlu0 %1915
    %v1917 = vsel %vm63, %v1916, 0
    %1919 = vmatprep.subr.mxu0 0.0
    %1920 = vmatpush1.msra.mxu0 0.0
    %1921 = vmatprep.subr.mxu0 0.0
    %1922 = vmatpush1.msra.mxu0 0.0
    %1923 = vmatprep.subr.mxu0 0.0
    %1924 = vmatpush1.msra.mxu0 0.0
    %1925 = vmatprep.subr.mxu0 0.0
    %1926 = vmatpush1.msra.mxu0 0.0
    %1927 = vmatprep.subr.mxu0 0.0
    %1928 = vmatpush1.msra.mxu0 0.0
    %1929 = vmatprep.subr.mxu0 0.0
    %1930 = vmatpush1.msra.mxu0 0.0
    %1931 = vmatprep.subr.mxu0 0.0
    %1932 = vmatpush1.msra.mxu0 0.0
    %1933 = vmatprep.subr.mxu0 0.0
    %1934 = vmatpush1.msra.mxu0 0.0
    %1935 = vmatprep.subr.mxu0 0.0
    %1936 = vmatpush1.msra.mxu0 0.0
    %1937 = vmatprep.subr.mxu0 0.0
    %1938 = vmatpush1.msra.mxu0 0.0
    %1939 = vmatprep.subr.mxu0 0.0
    %1940 = vmatpush1.msra.mxu0 0.0
    %1941 = vmatprep.subr.mxu0 0.0
    %1942 = vmatpush1.msra.mxu0 0.0
    %1943 = vmatprep.subr.mxu0 0.0
    %1944 = vmatpush1.msra.mxu0 %v52
    %1945 = vmatprep.subr.mxu0 0.0
    %1946 = vmatpush1.msra.mxu0 %v51
    %1947 = vmatprep.subr.mxu0 0.0
    %1948 = vmatpush1.msra.mxu0 %v50
    %1949 = vmatprep.subr.mxu0 0.0
    %1950 = vmatpush1.msra.mxu0 %v49
    %1951 = vmatprep.subr.mxu0 0.0
    %1952 = vmatpush2.msra.mxu0 0.0
    %1953 = vmatprep.subr.mxu0 0.0
    %1954 = vmatpush2.msra.mxu0 0.0
    %1955 = vmatprep.subr.mxu0 0.0
    %1956 = vmatpush2.msra.mxu0 0.0
    %1957 = vmatprep.subr.mxu0 0.0
    %1958 = vmatpush2.msra.mxu0 0.0
    %1959 = vmatprep.subr.mxu0 0.0
    %1960 = vmatpush2.msra.mxu0 0.0
    %1961 = vmatprep.subr.mxu0 0.0
    %1962 = vmatpush2.msra.mxu0 0.0
    %1963 = vmatprep.subr.mxu0 0.0
    %1964 = vmatpush2.msra.mxu0 0.0
    %1965 = vmatprep.subr.mxu0 0.0
    %1966 = vmatpush2.msra.mxu0 0.0
    %1967 = vmatprep.subr.mxu0 0.0
    %1968 = vmatpush2.msra.mxu0 0.0
    %1969 = vmatprep.subr.mxu0 0.0
    %1970 = vmatpush2.msra.mxu0 0.0
    %1971 = vmatprep.subr.mxu0 0.0
    %1972 = vmatpush2.msra.mxu0 0.0
    %1973 = vmatprep.subr.mxu0 0.0
    %1974 = vmatpush2.msra.mxu0 0.0
    %1975 = vmatprep.subr.mxu0 0.0
    %1976 = vmatpush2.msra.mxu0 0.0
    %1977 = vmatprep.subr.mxu0 0.0
    %1978 = vmatpush2.msra.mxu0 0.0
    %1979 = vmatprep.subr.mxu0 0.0
    %1980 = vmatpush2.msra.mxu0 0.0
    %1981 = vmatprep.subr.mxu0 0.0
    %1982 = vmatpush2.msra.mxu0 0.0
    %1983 = vmatprep.mubr.f32.mxu0 0.0
    %1984 = vmatmul.mubr.f32.gmra.mxu0 %v1917
    %v1985 = vpop.f32.mrf.mxu0
    %v1986 = vadd.f32 0.0, %v1985
    %v1987 = vpop.f32.mrf.mxu0
    %1988 = vdwg.mxu0
    %v1990 = vrot.slane %v1986, 1
    %v1991 = vrot.slane %v1986, 2
    %v1992 = vrot.slane %v1986, 3
    %v1993 = vrot.slane %v1986, 4
    %v1994 = vrot.slane %v1986, 5
    %v1995 = vrot.slane %v1986, 6
    %v1996 = vrot.slane %v1986, 7
    %v2005 = vadd.f32 %v1893, %v1986
    %v2006 = vadd.f32 %v1894, %v1990
    %v2007 = vadd.f32 %v1895, %v1991
    %v2008 = vadd.f32 %v1896, %v1992
    %v2009 = vadd.f32 %v1897, %v1993
    %v2010 = vadd.f32 %v1898, %v1994
    %v2011 = vadd.f32 %v1899, %v1995
    %v2012 = vadd.f32 %v1900, %v1996
    %v2013 = vxor.u32 %v2005, 2147483648
    %v2014 = vxor.u32 %v2006, 2147483648
    %v2015 = vxor.u32 %v2007, 2147483648
    %v2016 = vxor.u32 %v2008, 2147483648
    %v2017 = vxor.u32 %v2009, 2147483648
    %v2018 = vxor.u32 %v2010, 2147483648
    %v2019 = vxor.u32 %v2011, 2147483648
    %v2020 = vxor.u32 %v2012, 2147483648
    %v2021 = vmul.f32 %v2013, 1.442695
    %v2022 = vpow.pop %v2021
    %v2023 = vmul.f32 %v2014, 1.442695
    %v2024 = vpow.pop %v2023
    %v2025 = vmul.f32 %v2015, 1.442695
    %v2026 = vpow.pop %v2025
    %v2027 = vmul.f32 %v2016, 1.442695
    %v2028 = vpow.pop %v2027
    %v2029 = vmul.f32 %v2017, 1.442695
    %v2030 = vpow.pop %v2029
    %v2031 = vmul.f32 %v2018, 1.442695
    %v2032 = vpow.pop %v2031
    %v2033 = vmul.f32 %v2019, 1.442695
    %v2034 = vpow.pop %v2033
    %v2035 = vmul.f32 %v2020, 1.442695
    %v2036 = vpow.pop %v2035
    %v2037 = vadd.f32 %v2022, 1.0
    %v2038 = vadd.f32 %v2024, 1.0
    %v2039 = vadd.f32 %v2026, 1.0
    %v2040 = vadd.f32 %v2028, 1.0
    %v2041 = vadd.f32 %v2030, 1.0
    %v2042 = vadd.f32 %v2032, 1.0
    %v2043 = vadd.f32 %v2034, 1.0
    %v2044 = vadd.f32 %v2036, 1.0
    %v2045 = vrcp.pop %v2037
    %v2046 = vmul.f32 1.0, %v2045
    %v2047 = vrcp.pop %v2038
    %v2048 = vmul.f32 1.0, %v2047
    %v2049 = vrcp.pop %v2039
    %v2050 = vmul.f32 1.0, %v2049
    %v2051 = vrcp.pop %v2040
    %v2052 = vmul.f32 1.0, %v2051
    %v2053 = vrcp.pop %v2041
    %v2054 = vmul.f32 1.0, %v2053
    %v2055 = vrcp.pop %v2042
    %v2056 = vmul.f32 1.0, %v2055
    %v2057 = vrcp.pop %v2043
    %v2058 = vmul.f32 1.0, %v2057
    %v2059 = vrcp.pop %v2044
    %v2060 = vmul.f32 1.0, %v2059
    %v2061 = vadd.f32 %v1986, %v215
    %v2063 = vrot.slane %v2061, 1
    %v2064 = vrot.slane %v2061, 2
    %v2065 = vrot.slane %v2061, 3
    %v2066 = vrot.slane %v2061, 4
    %v2067 = vrot.slane %v2061, 5
    %v2068 = vrot.slane %v2061, 6
    %v2069 = vrot.slane %v2061, 7
    %2070 = vrot.lane.b32.xlu0 %v2061, 64
    %v2071 = vpop.permute.xlu0 %2070
    %2072 = vrot.lane.b32.xlu0 %v2063, 64
    %v2073 = vpop.permute.xlu0 %2072
    %2074 = vrot.lane.b32.xlu0 %v2064, 64
    %v2075 = vpop.permute.xlu0 %2074
    %2076 = vrot.lane.b32.xlu0 %v2065, 64
    %v2077 = vpop.permute.xlu0 %2076
    %2078 = vrot.lane.b32.xlu0 %v2066, 64
    %v2079 = vpop.permute.xlu0 %2078
    %2080 = vrot.lane.b32.xlu0 %v2067, 64
    %v2081 = vpop.permute.xlu0 %2080
    %2082 = vrot.lane.b32.xlu0 %v2068, 64
    %v2083 = vpop.permute.xlu0 %2082
    %2084 = vrot.lane.b32.xlu0 %v2069, 64
    %v2085 = vpop.permute.xlu0 %2084
    %v2094 = vmul.f32 %v2046, %v2071
    %v2095 = vmul.f32 %v2048, %v2073
    %v2096 = vmul.f32 %v2050, %v2075
    %v2097 = vmul.f32 %v2052, %v2077
    %v2098 = vmul.f32 %v2054, %v2079
    %v2099 = vmul.f32 %v2056, %v2081
    %v2100 = vmul.f32 %v2058, %v2083
    %v2101 = vmul.f32 %v2060, %v2085
    %2110 = vrot.lane.b32.xlu0 %v2094, 64
    %v2111 = vpop.permute.xlu0 %2110
    %2112 = vrot.lane.b32.xlu0 %v2095, 64
    %v2113 = vpop.permute.xlu0 %2112
    %2114 = vrot.lane.b32.xlu0 %v2096, 64
    %v2115 = vpop.permute.xlu0 %2114
    %2116 = vrot.lane.b32.xlu0 %v2097, 64
    %v2117 = vpop.permute.xlu0 %2116
    %2118 = vrot.lane.b32.xlu0 %v2098, 64
    %v2119 = vpop.permute.xlu0 %2118
    %2120 = vrot.lane.b32.xlu0 %v2099, 64
    %v2121 = vpop.permute.xlu0 %2120
    %2122 = vrot.lane.b32.xlu0 %v2100, 64
    %v2123 = vpop.permute.xlu0 %2122
    %2124 = vrot.lane.b32.xlu0 %v2101, 64
    %v2125 = vpop.permute.xlu0 %2124
    %v2134 = vadd.f32 %v1893, %v2111
    %v2135 = vadd.f32 %v1894, %v2113
    %v2136 = vadd.f32 %v1895, %v2115
    %v2137 = vadd.f32 %v1896, %v2117
    %v2138 = vadd.f32 %v1897, %v2119
    %v2139 = vadd.f32 %v1898, %v2121
    %v2140 = vadd.f32 %v1899, %v2123
    %v2141 = vadd.f32 %v1900, %v2125
    %v2142 = vtanh.pop %v2134
    %v2143 = vtanh.pop %v2135
    %v2144 = vtanh.pop %v2136
    %v2145 = vtanh.pop %v2137
    %v2146 = vtanh.pop %v2138
    %v2147 = vtanh.pop %v2139
    %v2148 = vtanh.pop %v2140
    %v2149 = vtanh.pop %v2141
    %v2150 = vsub.f32 1.0, %v2046
    %v2151 = vsub.f32 1.0, %v2048
    %v2152 = vsub.f32 1.0, %v2050
    %v2153 = vsub.f32 1.0, %v2052
    %v2154 = vsub.f32 1.0, %v2054
    %v2155 = vsub.f32 1.0, %v2056
    %v2156 = vsub.f32 1.0, %v2058
    %v2157 = vsub.f32 1.0, %v2060
    %2166 = vrot.lane.b32.xlu0 %v2142, 96
    %v2167 = vpop.permute.xlu0 %2166
    %2168 = vrot.lane.b32.xlu0 %v2143, 96
    %v2169 = vpop.permute.xlu0 %2168
    %2170 = vrot.lane.b32.xlu0 %v2144, 96
    %v2171 = vpop.permute.xlu0 %2170
    %2172 = vrot.lane.b32.xlu0 %v2145, 96
    %v2173 = vpop.permute.xlu0 %2172
    %2174 = vrot.lane.b32.xlu0 %v2146, 96
    %v2175 = vpop.permute.xlu0 %2174
    %2176 = vrot.lane.b32.xlu0 %v2147, 96
    %v2177 = vpop.permute.xlu0 %2176
    %2178 = vrot.lane.b32.xlu0 %v2148, 96
    %v2179 = vpop.permute.xlu0 %2178
    %2180 = vrot.lane.b32.xlu0 %v2149, 96
    %v2181 = vpop.permute.xlu0 %2180
    %v2190 = vmul.f32 %v2150, %v2167
    %v2191 = vmul.f32 %v2151, %v2169
    %v2192 = vmul.f32 %v2152, %v2171
    %v2193 = vmul.f32 %v2153, %v2173
    %v2194 = vmul.f32 %v2154, %v2175
    %v2195 = vmul.f32 %v2155, %v2177
    %v2196 = vmul.f32 %v2156, %v2179
    %v2197 = vmul.f32 %v2157, %v2181
    %v2198 = vmul.f32 %v2046, %v1845
    %v2199 = vmul.f32 %v2048, %v1846
    %v2200 = vmul.f32 %v2050, %v1847
    %v2201 = vmul.f32 %v2052, %v1848
    %v2202 = vmul.f32 %v2054, %v1849
    %v2203 = vmul.f32 %v2056, %v1850
    %v2204 = vmul.f32 %v2058, %v1851
    %v2205 = vmul.f32 %v2060, %v1852
    %v2206 = vadd.f32 %v2190, %v2198
    %v2207 = vadd.f32 %v2191, %v2199
    %v2208 = vadd.f32 %v2192, %v2200
    %v2209 = vadd.f32 %v2193, %v2201
    %v2210 = vadd.f32 %v2194, %v2202
    %v2211 = vadd.f32 %v2195, %v2203
    %v2212 = vadd.f32 %v2196, %v2204
    %v2213 = vadd.f32 %v2197, %v2205
    %2222 = vrot.lane.b32.xlu0 %v2206, 96
    %v2223 = vpop.permute.xlu0 %2222
    %2224 = vrot.lane.b32.xlu0 %v2207, 96
    %v2225 = vpop.permute.xlu0 %2224
    %2226 = vrot.lane.b32.xlu0 %v2208, 96
    %v2227 = vpop.permute.xlu0 %2226
    %2228 = vrot.lane.b32.xlu0 %v2209, 96
    %v2229 = vpop.permute.xlu0 %2228
    %2230 = vrot.lane.b32.xlu0 %v2210, 96
    %v2231 = vpop.permute.xlu0 %2230
    %2232 = vrot.lane.b32.xlu0 %v2211, 96
    %v2233 = vpop.permute.xlu0 %2232
    %2234 = vrot.lane.b32.xlu0 %v2212, 96
    %v2235 = vpop.permute.xlu0 %2234
    %2236 = vrot.lane.b32.xlu0 %v2213, 96
    %v2237 = vpop.permute.xlu0 %2236
    %2246 = vst.msk [vmem:[#allocation8 + $0x5] sm:$0x1] %vm433, %v2223
    %2247 = vst.msk [vmem:[#allocation8 + $0xd] sm:$0x1] %vm433, %v2225
    %2248 = vst.msk [vmem:[#allocation8 + $0x15] sm:$0x1] %vm433, %v2227
    %2249 = vst.msk [vmem:[#allocation8 + $0x1d] sm:$0x1] %vm433, %v2229
    %2250 = vst.msk [vmem:[#allocation8 + $0x25] sm:$0x1] %vm433, %v2231
    %2251 = vst.msk [vmem:[#allocation8 + $0x2d] sm:$0x1] %vm433, %v2233
    %2252 = vst.msk [vmem:[#allocation8 + $0x35] sm:$0x1] %vm433, %v2235
    %2253 = vst.msk [vmem:[#allocation8 + $0x3d] sm:$0x1] %vm433, %v2237
    %v2254 = vld [vmem:[#allocation3 + $0x6] sm:$0x1]
    %v2255 = vld [vmem:[#allocation3 + $0xe] sm:$0x1]
    %v2256 = vld [vmem:[#allocation3 + $0x16] sm:$0x1]
    %v2257 = vld [vmem:[#allocation3 + $0x1e] sm:$0x1]
    %v2258 = vld [vmem:[#allocation3 + $0x26] sm:$0x1]
    %v2259 = vld [vmem:[#allocation3 + $0x2e] sm:$0x1]
    %v2260 = vld [vmem:[#allocation3 + $0x36] sm:$0x1]
    %v2261 = vld [vmem:[#allocation3 + $0x3e] sm:$0x1]
    %v2262 = vrot.slane %v2207, 7
    %v2263 = vsel %vm451, %v2262, %v2206
    %v2264 = vrot.slane %v2208, 6
    %v2265 = vsel %vm454, %v2264, %v2263
    %v2266 = vrot.slane %v2209, 5
    %v2267 = vsel %vm457, %v2266, %v2265
    %v2268 = vrot.slane %v2210, 4
    %v2269 = vsel %vm460, %v2268, %v2267
    %v2270 = vrot.slane %v2211, 3
    %v2271 = vsel %vm463, %v2270, %v2269
    %v2272 = vrot.slane %v2212, 2
    %v2273 = vsel %vm466, %v2272, %v2271
    %v2274 = vrot.slane %v2213, 1
    %v2275 = vsel %vm469, %v2274, %v2273
    %2276 = vrot.lane.b32.xlu0 %v2275, 96
    %v2277 = vpop.permute.xlu0 %2276
    %v2278 = vsel %vm63, %v2277, 0
    %2280 = vmatprep.subr.mxu0 0.0
    %2281 = vmatpush1.msra.mxu0 0.0
    %2282 = vmatprep.subr.mxu0 0.0
    %2283 = vmatpush1.msra.mxu0 0.0
    %2284 = vmatprep.subr.mxu0 0.0
    %2285 = vmatpush1.msra.mxu0 0.0
    %2286 = vmatprep.subr.mxu0 0.0
    %2287 = vmatpush1.msra.mxu0 0.0
    %2288 = vmatprep.subr.mxu0 0.0
    %2289 = vmatpush1.msra.mxu0 0.0
    %2290 = vmatprep.subr.mxu0 0.0
    %2291 = vmatpush1.msra.mxu0 0.0
    %2292 = vmatprep.subr.mxu0 0.0
    %2293 = vmatpush1.msra.mxu0 0.0
    %2294 = vmatprep.subr.mxu0 0.0
    %2295 = vmatpush1.msra.mxu0 0.0
    %2296 = vmatprep.subr.mxu0 0.0
    %2297 = vmatpush1.msra.mxu0 0.0
    %2298 = vmatprep.subr.mxu0 0.0
    %2299 = vmatpush1.msra.mxu0 0.0
    %2300 = vmatprep.subr.mxu0 0.0
    %2301 = vmatpush1.msra.mxu0 0.0
    %2302 = vmatprep.subr.mxu0 0.0
    %2303 = vmatpush1.msra.mxu0 0.0
    %2304 = vmatprep.subr.mxu0 0.0
    %2305 = vmatpush1.msra.mxu0 %v52
    %2306 = vmatprep.subr.mxu0 0.0
    %2307 = vmatpush1.msra.mxu0 %v51
    %2308 = vmatprep.subr.mxu0 0.0
    %2309 = vmatpush1.msra.mxu0 %v50
    %2310 = vmatprep.subr.mxu0 0.0
    %2311 = vmatpush1.msra.mxu0 %v49
    %2312 = vmatprep.subr.mxu0 0.0
    %2313 = vmatpush2.msra.mxu0 0.0
    %2314 = vmatprep.subr.mxu0 0.0
    %2315 = vmatpush2.msra.mxu0 0.0
    %2316 = vmatprep.subr.mxu0 0.0
    %2317 = vmatpush2.msra.mxu0 0.0
    %2318 = vmatprep.subr.mxu0 0.0
    %2319 = vmatpush2.msra.mxu0 0.0
    %2320 = vmatprep.subr.mxu0 0.0
    %2321 = vmatpush2.msra.mxu0 0.0
    %2322 = vmatprep.subr.mxu0 0.0
    %2323 = vmatpush2.msra.mxu0 0.0
    %2324 = vmatprep.subr.mxu0 0.0
    %2325 = vmatpush2.msra.mxu0 0.0
    %2326 = vmatprep.subr.mxu0 0.0
    %2327 = vmatpush2.msra.mxu0 0.0
    %2328 = vmatprep.subr.mxu0 0.0
    %2329 = vmatpush2.msra.mxu0 0.0
    %2330 = vmatprep.subr.mxu0 0.0
    %2331 = vmatpush2.msra.mxu0 0.0
    %2332 = vmatprep.subr.mxu0 0.0
    %2333 = vmatpush2.msra.mxu0 0.0
    %2334 = vmatprep.subr.mxu0 0.0
    %2335 = vmatpush2.msra.mxu0 0.0
    %2336 = vmatprep.subr.mxu0 0.0
    %2337 = vmatpush2.msra.mxu0 0.0
    %2338 = vmatprep.subr.mxu0 0.0
    %2339 = vmatpush2.msra.mxu0 0.0
    %2340 = vmatprep.subr.mxu0 0.0
    %2341 = vmatpush2.msra.mxu0 0.0
    %2342 = vmatprep.subr.mxu0 0.0
    %2343 = vmatpush2.msra.mxu0 0.0
    %2344 = vmatprep.mubr.f32.mxu0 0.0
    %2345 = vmatmul.mubr.f32.gmra.mxu0 %v2278
    %v2346 = vpop.f32.mrf.mxu0
    %v2347 = vadd.f32 0.0, %v2346
    %v2348 = vpop.f32.mrf.mxu0
    %2349 = vdwg.mxu0
    %v2351 = vrot.slane %v2347, 1
    %v2352 = vrot.slane %v2347, 2
    %v2353 = vrot.slane %v2347, 3
    %v2354 = vrot.slane %v2347, 4
    %v2355 = vrot.slane %v2347, 5
    %v2356 = vrot.slane %v2347, 6
    %v2357 = vrot.slane %v2347, 7
    %v2366 = vadd.f32 %v2254, %v2347
    %v2367 = vadd.f32 %v2255, %v2351
    %v2368 = vadd.f32 %v2256, %v2352
    %v2369 = vadd.f32 %v2257, %v2353
    %v2370 = vadd.f32 %v2258, %v2354
    %v2371 = vadd.f32 %v2259, %v2355
    %v2372 = vadd.f32 %v2260, %v2356
    %v2373 = vadd.f32 %v2261, %v2357
    %v2374 = vxor.u32 %v2366, 2147483648
    %v2375 = vxor.u32 %v2367, 2147483648
    %v2376 = vxor.u32 %v2368, 2147483648
    %v2377 = vxor.u32 %v2369, 2147483648
    %v2378 = vxor.u32 %v2370, 2147483648
    %v2379 = vxor.u32 %v2371, 2147483648
    %v2380 = vxor.u32 %v2372, 2147483648
    %v2381 = vxor.u32 %v2373, 2147483648
    %v2382 = vmul.f32 %v2374, 1.442695
    %v2383 = vpow.pop %v2382
    %v2384 = vmul.f32 %v2375, 1.442695
    %v2385 = vpow.pop %v2384
    %v2386 = vmul.f32 %v2376, 1.442695
    %v2387 = vpow.pop %v2386
    %v2388 = vmul.f32 %v2377, 1.442695
    %v2389 = vpow.pop %v2388
    %v2390 = vmul.f32 %v2378, 1.442695
    %v2391 = vpow.pop %v2390
    %v2392 = vmul.f32 %v2379, 1.442695
    %v2393 = vpow.pop %v2392
    %v2394 = vmul.f32 %v2380, 1.442695
    %v2395 = vpow.pop %v2394
    %v2396 = vmul.f32 %v2381, 1.442695
    %v2397 = vpow.pop %v2396
    %v2398 = vadd.f32 %v2383, 1.0
    %v2399 = vadd.f32 %v2385, 1.0
    %v2400 = vadd.f32 %v2387, 1.0
    %v2401 = vadd.f32 %v2389, 1.0
    %v2402 = vadd.f32 %v2391, 1.0
    %v2403 = vadd.f32 %v2393, 1.0
    %v2404 = vadd.f32 %v2395, 1.0
    %v2405 = vadd.f32 %v2397, 1.0
    %v2406 = vrcp.pop %v2398
    %v2407 = vmul.f32 1.0, %v2406
    %v2408 = vrcp.pop %v2399
    %v2409 = vmul.f32 1.0, %v2408
    %v2410 = vrcp.pop %v2400
    %v2411 = vmul.f32 1.0, %v2410
    %v2412 = vrcp.pop %v2401
    %v2413 = vmul.f32 1.0, %v2412
    %v2414 = vrcp.pop %v2402
    %v2415 = vmul.f32 1.0, %v2414
    %v2416 = vrcp.pop %v2403
    %v2417 = vmul.f32 1.0, %v2416
    %v2418 = vrcp.pop %v2404
    %v2419 = vmul.f32 1.0, %v2418
    %v2420 = vrcp.pop %v2405
    %v2421 = vmul.f32 1.0, %v2420
    %v2422 = vadd.f32 %v2347, %v215
    %v2424 = vrot.slane %v2422, 1
    %v2425 = vrot.slane %v2422, 2
    %v2426 = vrot.slane %v2422, 3
    %v2427 = vrot.slane %v2422, 4
    %v2428 = vrot.slane %v2422, 5
    %v2429 = vrot.slane %v2422, 6
    %v2430 = vrot.slane %v2422, 7
    %2431 = vrot.lane.b32.xlu0 %v2422, 64
    %v2432 = vpop.permute.xlu0 %2431
    %2433 = vrot.lane.b32.xlu0 %v2424, 64
    %v2434 = vpop.permute.xlu0 %2433
    %2435 = vrot.lane.b32.xlu0 %v2425, 64
    %v2436 = vpop.permute.xlu0 %2435
    %2437 = vrot.lane.b32.xlu0 %v2426, 64
    %v2438 = vpop.permute.xlu0 %2437
    %2439 = vrot.lane.b32.xlu0 %v2427, 64
    %v2440 = vpop.permute.xlu0 %2439
    %2441 = vrot.lane.b32.xlu0 %v2428, 64
    %v2442 = vpop.permute.xlu0 %2441
    %2443 = vrot.lane.b32.xlu0 %v2429, 64
    %v2444 = vpop.permute.xlu0 %2443
    %2445 = vrot.lane.b32.xlu0 %v2430, 64
    %v2446 = vpop.permute.xlu0 %2445
    %v2455 = vmul.f32 %v2407, %v2432
    %v2456 = vmul.f32 %v2409, %v2434
    %v2457 = vmul.f32 %v2411, %v2436
    %v2458 = vmul.f32 %v2413, %v2438
    %v2459 = vmul.f32 %v2415, %v2440
    %v2460 = vmul.f32 %v2417, %v2442
    %v2461 = vmul.f32 %v2419, %v2444
    %v2462 = vmul.f32 %v2421, %v2446
    %2471 = vrot.lane.b32.xlu0 %v2455, 64
    %v2472 = vpop.permute.xlu0 %2471
    %2473 = vrot.lane.b32.xlu0 %v2456, 64
    %v2474 = vpop.permute.xlu0 %2473
    %2475 = vrot.lane.b32.xlu0 %v2457, 64
    %v2476 = vpop.permute.xlu0 %2475
    %2477 = vrot.lane.b32.xlu0 %v2458, 64
    %v2478 = vpop.permute.xlu0 %2477
    %2479 = vrot.lane.b32.xlu0 %v2459, 64
    %v2480 = vpop.permute.xlu0 %2479
    %2481 = vrot.lane.b32.xlu0 %v2460, 64
    %v2482 = vpop.permute.xlu0 %2481
    %2483 = vrot.lane.b32.xlu0 %v2461, 64
    %v2484 = vpop.permute.xlu0 %2483
    %2485 = vrot.lane.b32.xlu0 %v2462, 64
    %v2486 = vpop.permute.xlu0 %2485
    %v2495 = vadd.f32 %v2254, %v2472
    %v2496 = vadd.f32 %v2255, %v2474
    %v2497 = vadd.f32 %v2256, %v2476
    %v2498 = vadd.f32 %v2257, %v2478
    %v2499 = vadd.f32 %v2258, %v2480
    %v2500 = vadd.f32 %v2259, %v2482
    %v2501 = vadd.f32 %v2260, %v2484
    %v2502 = vadd.f32 %v2261, %v2486
    %v2503 = vtanh.pop %v2495
    %v2504 = vtanh.pop %v2496
    %v2505 = vtanh.pop %v2497
    %v2506 = vtanh.pop %v2498
    %v2507 = vtanh.pop %v2499
    %v2508 = vtanh.pop %v2500
    %v2509 = vtanh.pop %v2501
    %v2510 = vtanh.pop %v2502
    %v2511 = vsub.f32 1.0, %v2407
    %v2512 = vsub.f32 1.0, %v2409
    %v2513 = vsub.f32 1.0, %v2411
    %v2514 = vsub.f32 1.0, %v2413
    %v2515 = vsub.f32 1.0, %v2415
    %v2516 = vsub.f32 1.0, %v2417
    %v2517 = vsub.f32 1.0, %v2419
    %v2518 = vsub.f32 1.0, %v2421
    %2527 = vrot.lane.b32.xlu0 %v2503, 96
    %v2528 = vpop.permute.xlu0 %2527
    %2529 = vrot.lane.b32.xlu0 %v2504, 96
    %v2530 = vpop.permute.xlu0 %2529
    %2531 = vrot.lane.b32.xlu0 %v2505, 96
    %v2532 = vpop.permute.xlu0 %2531
    %2533 = vrot.lane.b32.xlu0 %v2506, 96
    %v2534 = vpop.permute.xlu0 %2533
    %2535 = vrot.lane.b32.xlu0 %v2507, 96
    %v2536 = vpop.permute.xlu0 %2535
    %2537 = vrot.lane.b32.xlu0 %v2508, 96
    %v2538 = vpop.permute.xlu0 %2537
    %2539 = vrot.lane.b32.xlu0 %v2509, 96
    %v2540 = vpop.permute.xlu0 %2539
    %2541 = vrot.lane.b32.xlu0 %v2510, 96
    %v2542 = vpop.permute.xlu0 %2541
    %v2551 = vmul.f32 %v2511, %v2528
    %v2552 = vmul.f32 %v2512, %v2530
    %v2553 = vmul.f32 %v2513, %v2532
    %v2554 = vmul.f32 %v2514, %v2534
    %v2555 = vmul.f32 %v2515, %v2536
    %v2556 = vmul.f32 %v2516, %v2538
    %v2557 = vmul.f32 %v2517, %v2540
    %v2558 = vmul.f32 %v2518, %v2542
    %v2559 = vmul.f32 %v2407, %v2206
    %v2560 = vmul.f32 %v2409, %v2207
    %v2561 = vmul.f32 %v2411, %v2208
    %v2562 = vmul.f32 %v2413, %v2209
    %v2563 = vmul.f32 %v2415, %v2210
    %v2564 = vmul.f32 %v2417, %v2211
    %v2565 = vmul.f32 %v2419, %v2212
    %v2566 = vmul.f32 %v2421, %v2213
    %v2567 = vadd.f32 %v2551, %v2559
    %v2568 = vadd.f32 %v2552, %v2560
    %v2569 = vadd.f32 %v2553, %v2561
    %v2570 = vadd.f32 %v2554, %v2562
    %v2571 = vadd.f32 %v2555, %v2563
    %v2572 = vadd.f32 %v2556, %v2564
    %v2573 = vadd.f32 %v2557, %v2565
    %v2574 = vadd.f32 %v2558, %v2566
    %2583 = vrot.lane.b32.xlu0 %v2567, 96
    %v2584 = vpop.permute.xlu0 %2583
    %2585 = vrot.lane.b32.xlu0 %v2568, 96
    %v2586 = vpop.permute.xlu0 %2585
    %2587 = vrot.lane.b32.xlu0 %v2569, 96
    %v2588 = vpop.permute.xlu0 %2587
    %2589 = vrot.lane.b32.xlu0 %v2570, 96
    %v2590 = vpop.permute.xlu0 %2589
    %2591 = vrot.lane.b32.xlu0 %v2571, 96
    %v2592 = vpop.permute.xlu0 %2591
    %2593 = vrot.lane.b32.xlu0 %v2572, 96
    %v2594 = vpop.permute.xlu0 %2593
    %2595 = vrot.lane.b32.xlu0 %v2573, 96
    %v2596 = vpop.permute.xlu0 %2595
    %2597 = vrot.lane.b32.xlu0 %v2574, 96
    %v2598 = vpop.permute.xlu0 %2597
    %2607 = vst.msk [vmem:[#allocation8 + $0x6] sm:$0x1] %vm433, %v2584
    %2608 = vst.msk [vmem:[#allocation8 + $0xe] sm:$0x1] %vm433, %v2586
    %2609 = vst.msk [vmem:[#allocation8 + $0x16] sm:$0x1] %vm433, %v2588
    %2610 = vst.msk [vmem:[#allocation8 + $0x1e] sm:$0x1] %vm433, %v2590
    %2611 = vst.msk [vmem:[#allocation8 + $0x26] sm:$0x1] %vm433, %v2592
    %2612 = vst.msk [vmem:[#allocation8 + $0x2e] sm:$0x1] %vm433, %v2594
    %2613 = vst.msk [vmem:[#allocation8 + $0x36] sm:$0x1] %vm433, %v2596
    %2614 = vst.msk [vmem:[#allocation8 + $0x3e] sm:$0x1] %vm433, %v2598
    %v2615 = vld [vmem:[#allocation3 + $0x7] sm:$0x1]
    %v2616 = vld [vmem:[#allocation3 + $0xf] sm:$0x1]
    %v2617 = vld [vmem:[#allocation3 + $0x17] sm:$0x1]
    %v2618 = vld [vmem:[#allocation3 + $0x1f] sm:$0x1]
    %v2619 = vld [vmem:[#allocation3 + $0x27] sm:$0x1]
    %v2620 = vld [vmem:[#allocation3 + $0x2f] sm:$0x1]
    %v2621 = vld [vmem:[#allocation3 + $0x37] sm:$0x1]
    %v2622 = vld [vmem:[#allocation3 + $0x3f] sm:$0x1]
    %v2623 = vrot.slane %v2568, 7
    %v2624 = vsel %vm451, %v2623, %v2567
    %v2625 = vrot.slane %v2569, 6
    %v2626 = vsel %vm454, %v2625, %v2624
    %v2627 = vrot.slane %v2570, 5
    %v2628 = vsel %vm457, %v2627, %v2626
    %v2629 = vrot.slane %v2571, 4
    %v2630 = vsel %vm460, %v2629, %v2628
    %v2631 = vrot.slane %v2572, 3
    %v2632 = vsel %vm463, %v2631, %v2630
    %v2633 = vrot.slane %v2573, 2
    %v2634 = vsel %vm466, %v2633, %v2632
    %v2635 = vrot.slane %v2574, 1
    %v2636 = vsel %vm469, %v2635, %v2634
    %2637 = vrot.lane.b32.xlu0 %v2636, 96
    %v2638 = vpop.permute.xlu0 %2637
    %v2639 = vsel %vm63, %v2638, 0
    %2641 = vmatprep.subr.mxu0 0.0
    %2642 = vmatpush1.msra.mxu0 0.0
    %2643 = vmatprep.subr.mxu0 0.0
    %2644 = vmatpush1.msra.mxu0 0.0
    %2645 = vmatprep.subr.mxu0 0.0
    %2646 = vmatpush1.msra.mxu0 0.0
    %2647 = vmatprep.subr.mxu0 0.0
    %2648 = vmatpush1.msra.mxu0 0.0
    %2649 = vmatprep.subr.mxu0 0.0
    %2650 = vmatpush1.msra.mxu0 0.0
    %2651 = vmatprep.subr.mxu0 0.0
    %2652 = vmatpush1.msra.mxu0 0.0
    %2653 = vmatprep.subr.mxu0 0.0
    %2654 = vmatpush1.msra.mxu0 0.0
    %2655 = vmatprep.subr.mxu0 0.0
    %2656 = vmatpush1.msra.mxu0 0.0
    %2657 = vmatprep.subr.mxu0 0.0
    %2658 = vmatpush1.msra.mxu0 0.0
    %2659 = vmatprep.subr.mxu0 0.0
    %2660 = vmatpush1.msra.mxu0 0.0
    %2661 = vmatprep.subr.mxu0 0.0
    %2662 = vmatpush1.msra.mxu0 0.0
    %2663 = vmatprep.subr.mxu0 0.0
    %2664 = vmatpush1.msra.mxu0 0.0
    %2665 = vmatprep.subr.mxu0 0.0
    %2666 = vmatpush1.msra.mxu0 %v52
    %2667 = vmatprep.subr.mxu0 0.0
    %2668 = vmatpush1.msra.mxu0 %v51
    %2669 = vmatprep.subr.mxu0 0.0
    %2670 = vmatpush1.msra.mxu0 %v50
    %2671 = vmatprep.subr.mxu0 0.0
    %2672 = vmatpush1.msra.mxu0 %v49
    %2673 = vmatprep.subr.mxu0 0.0
    %2674 = vmatpush2.msra.mxu0 0.0
    %2675 = vmatprep.subr.mxu0 0.0
    %2676 = vmatpush2.msra.mxu0 0.0
    %2677 = vmatprep.subr.mxu0 0.0
    %2678 = vmatpush2.msra.mxu0 0.0
    %2679 = vmatprep.subr.mxu0 0.0
    %2680 = vmatpush2.msra.mxu0 0.0
    %2681 = vmatprep.subr.mxu0 0.0
    %2682 = vmatpush2.msra.mxu0 0.0
    %2683 = vmatprep.subr.mxu0 0.0
    %2684 = vmatpush2.msra.mxu0 0.0
    %2685 = vmatprep.subr.mxu0 0.0
    %2686 = vmatpush2.msra.mxu0 0.0
    %2687 = vmatprep.subr.mxu0 0.0
    %2688 = vmatpush2.msra.mxu0 0.0
    %2689 = vmatprep.subr.mxu0 0.0
    %2690 = vmatpush2.msra.mxu0 0.0
    %2691 = vmatprep.subr.mxu0 0.0
    %2692 = vmatpush2.msra.mxu0 0.0
    %2693 = vmatprep.subr.mxu0 0.0
    %2694 = vmatpush2.msra.mxu0 0.0
    %2695 = vmatprep.subr.mxu0 0.0
    %2696 = vmatpush2.msra.mxu0 0.0
    %2697 = vmatprep.subr.mxu0 0.0
    %2698 = vmatpush2.msra.mxu0 0.0
    %2699 = vmatprep.subr.mxu0 0.0
    %2700 = vmatpush2.msra.mxu0 0.0
    %2701 = vmatprep.subr.mxu0 0.0
    %2702 = vmatpush2.msra.mxu0 0.0
    %2703 = vmatprep.subr.mxu0 0.0
    %2704 = vmatpush2.msra.mxu0 0.0
    %2705 = vmatprep.mubr.f32.mxu0 0.0
    %2706 = vmatmul.mubr.f32.gmra.mxu0 %v2639
    %v2707 = vpop.f32.mrf.mxu0
    %v2708 = vadd.f32 0.0, %v2707
    %v2709 = vpop.f32.mrf.mxu0
    %2710 = vdwg.mxu0
    %v2712 = vrot.slane %v2708, 1
    %v2713 = vrot.slane %v2708, 2
    %v2714 = vrot.slane %v2708, 3
    %v2715 = vrot.slane %v2708, 4
    %v2716 = vrot.slane %v2708, 5
    %v2717 = vrot.slane %v2708, 6
    %v2718 = vrot.slane %v2708, 7
    %v2727 = vadd.f32 %v2615, %v2708
    %v2728 = vadd.f32 %v2616, %v2712
    %v2729 = vadd.f32 %v2617, %v2713
    %v2730 = vadd.f32 %v2618, %v2714
    %v2731 = vadd.f32 %v2619, %v2715
    %v2732 = vadd.f32 %v2620, %v2716
    %v2733 = vadd.f32 %v2621, %v2717
    %v2734 = vadd.f32 %v2622, %v2718
    %v2735 = vxor.u32 %v2727, 2147483648
    %v2736 = vxor.u32 %v2728, 2147483648
    %v2737 = vxor.u32 %v2729, 2147483648
    %v2738 = vxor.u32 %v2730, 2147483648
    %v2739 = vxor.u32 %v2731, 2147483648
    %v2740 = vxor.u32 %v2732, 2147483648
    %v2741 = vxor.u32 %v2733, 2147483648
    %v2742 = vxor.u32 %v2734, 2147483648
    %v2743 = vmul.f32 %v2735, 1.442695
    %v2744 = vpow.pop %v2743
    %v2745 = vmul.f32 %v2736, 1.442695
    %v2746 = vpow.pop %v2745
    %v2747 = vmul.f32 %v2737, 1.442695
    %v2748 = vpow.pop %v2747
    %v2749 = vmul.f32 %v2738, 1.442695
    %v2750 = vpow.pop %v2749
    %v2751 = vmul.f32 %v2739, 1.442695
    %v2752 = vpow.pop %v2751
    %v2753 = vmul.f32 %v2740, 1.442695
    %v2754 = vpow.pop %v2753
    %v2755 = vmul.f32 %v2741, 1.442695
    %v2756 = vpow.pop %v2755
    %v2757 = vmul.f32 %v2742, 1.442695
    %v2758 = vpow.pop %v2757
    %v2759 = vadd.f32 %v2744, 1.0
    %v2760 = vadd.f32 %v2746, 1.0
    %v2761 = vadd.f32 %v2748, 1.0
    %v2762 = vadd.f32 %v2750, 1.0
    %v2763 = vadd.f32 %v2752, 1.0
    %v2764 = vadd.f32 %v2754, 1.0
    %v2765 = vadd.f32 %v2756, 1.0
    %v2766 = vadd.f32 %v2758, 1.0
    %v2767 = vrcp.pop %v2759
    %v2768 = vmul.f32 1.0, %v2767
    %v2769 = vrcp.pop %v2760
    %v2770 = vmul.f32 1.0, %v2769
    %v2771 = vrcp.pop %v2761
    %v2772 = vmul.f32 1.0, %v2771
    %v2773 = vrcp.pop %v2762
    %v2774 = vmul.f32 1.0, %v2773
    %v2775 = vrcp.pop %v2763
    %v2776 = vmul.f32 1.0, %v2775
    %v2777 = vrcp.pop %v2764
    %v2778 = vmul.f32 1.0, %v2777
    %v2779 = vrcp.pop %v2765
    %v2780 = vmul.f32 1.0, %v2779
    %v2781 = vrcp.pop %v2766
    %v2782 = vmul.f32 1.0, %v2781
    %v2783 = vadd.f32 %v2708, %v215
    %v2785 = vrot.slane %v2783, 1
    %v2786 = vrot.slane %v2783, 2
    %v2787 = vrot.slane %v2783, 3
    %v2788 = vrot.slane %v2783, 4
    %v2789 = vrot.slane %v2783, 5
    %v2790 = vrot.slane %v2783, 6
    %v2791 = vrot.slane %v2783, 7
    %2792 = vrot.lane.b32.xlu0 %v2783, 64
    %v2793 = vpop.permute.xlu0 %2792
    %2794 = vrot.lane.b32.xlu0 %v2785, 64
    %v2795 = vpop.permute.xlu0 %2794
    %2796 = vrot.lane.b32.xlu0 %v2786, 64
    %v2797 = vpop.permute.xlu0 %2796
    %2798 = vrot.lane.b32.xlu0 %v2787, 64
    %v2799 = vpop.permute.xlu0 %2798
    %2800 = vrot.lane.b32.xlu0 %v2788, 64
    %v2801 = vpop.permute.xlu0 %2800
    %2802 = vrot.lane.b32.xlu0 %v2789, 64
    %v2803 = vpop.permute.xlu0 %2802
    %2804 = vrot.lane.b32.xlu0 %v2790, 64
    %v2805 = vpop.permute.xlu0 %2804
    %2806 = vrot.lane.b32.xlu0 %v2791, 64
    %v2807 = vpop.permute.xlu0 %2806
    %v2816 = vmul.f32 %v2768, %v2793
    %v2817 = vmul.f32 %v2770, %v2795
    %v2818 = vmul.f32 %v2772, %v2797
    %v2819 = vmul.f32 %v2774, %v2799
    %v2820 = vmul.f32 %v2776, %v2801
    %v2821 = vmul.f32 %v2778, %v2803
    %v2822 = vmul.f32 %v2780, %v2805
    %v2823 = vmul.f32 %v2782, %v2807
    %2832 = vrot.lane.b32.xlu0 %v2816, 64
    %v2833 = vpop.permute.xlu0 %2832
    %2834 = vrot.lane.b32.xlu0 %v2817, 64
    %v2835 = vpop.permute.xlu0 %2834
    %2836 = vrot.lane.b32.xlu0 %v2818, 64
    %v2837 = vpop.permute.xlu0 %2836
    %2838 = vrot.lane.b32.xlu0 %v2819, 64
    %v2839 = vpop.permute.xlu0 %2838
    %2840 = vrot.lane.b32.xlu0 %v2820, 64
    %v2841 = vpop.permute.xlu0 %2840
    %2842 = vrot.lane.b32.xlu0 %v2821, 64
    %v2843 = vpop.permute.xlu0 %2842
    %2844 = vrot.lane.b32.xlu0 %v2822, 64
    %v2845 = vpop.permute.xlu0 %2844
    %2846 = vrot.lane.b32.xlu0 %v2823, 64
    %v2847 = vpop.permute.xlu0 %2846
    %v2856 = vadd.f32 %v2615, %v2833
    %v2857 = vadd.f32 %v2616, %v2835
    %v2858 = vadd.f32 %v2617, %v2837
    %v2859 = vadd.f32 %v2618, %v2839
    %v2860 = vadd.f32 %v2619, %v2841
    %v2861 = vadd.f32 %v2620, %v2843
    %v2862 = vadd.f32 %v2621, %v2845
    %v2863 = vadd.f32 %v2622, %v2847
    %v2864 = vtanh.pop %v2856
    %v2865 = vtanh.pop %v2857
    %v2866 = vtanh.pop %v2858
    %v2867 = vtanh.pop %v2859
    %v2868 = vtanh.pop %v2860
    %v2869 = vtanh.pop %v2861
    %v2870 = vtanh.pop %v2862
    %v2871 = vtanh.pop %v2863
    %v2872 = vsub.f32 1.0, %v2768
    %v2873 = vsub.f32 1.0, %v2770
    %v2874 = vsub.f32 1.0, %v2772
    %v2875 = vsub.f32 1.0, %v2774
    %v2876 = vsub.f32 1.0, %v2776
    %v2877 = vsub.f32 1.0, %v2778
    %v2878 = vsub.f32 1.0, %v2780
    %v2879 = vsub.f32 1.0, %v2782
    %2888 = vrot.lane.b32.xlu0 %v2864, 96
    %v2889 = vpop.permute.xlu0 %2888
    %2890 = vrot.lane.b32.xlu0 %v2865, 96
    %v2891 = vpop.permute.xlu0 %2890
    %2892 = vrot.lane.b32.xlu0 %v2866, 96
    %v2893 = vpop.permute.xlu0 %2892
    %2894 = vrot.lane.b32.xlu0 %v2867, 96
    %v2895 = vpop.permute.xlu0 %2894
    %2896 = vrot.lane.b32.xlu0 %v2868, 96
    %v2897 = vpop.permute.xlu0 %2896
    %2898 = vrot.lane.b32.xlu0 %v2869, 96
    %v2899 = vpop.permute.xlu0 %2898
    %2900 = vrot.lane.b32.xlu0 %v2870, 96
    %v2901 = vpop.permute.xlu0 %2900
    %2902 = vrot.lane.b32.xlu0 %v2871, 96
    %v2903 = vpop.permute.xlu0 %2902
    %v2912 = vmul.f32 %v2872, %v2889
    %v2913 = vmul.f32 %v2873, %v2891
    %v2914 = vmul.f32 %v2874, %v2893
    %v2915 = vmul.f32 %v2875, %v2895
    %v2916 = vmul.f32 %v2876, %v2897
    %v2917 = vmul.f32 %v2877, %v2899
    %v2918 = vmul.f32 %v2878, %v2901
    %v2919 = vmul.f32 %v2879, %v2903
    %v2920 = vmul.f32 %v2768, %v2567
    %v2921 = vmul.f32 %v2770, %v2568
    %v2922 = vmul.f32 %v2772, %v2569
    %v2923 = vmul.f32 %v2774, %v2570
    %v2924 = vmul.f32 %v2776, %v2571
    %v2925 = vmul.f32 %v2778, %v2572
    %v2926 = vmul.f32 %v2780, %v2573
    %v2927 = vmul.f32 %v2782, %v2574
    %v2928 = vadd.f32 %v2912, %v2920
    %v2929 = vadd.f32 %v2913, %v2921
    %v2930 = vadd.f32 %v2914, %v2922
    %v2931 = vadd.f32 %v2915, %v2923
    %v2932 = vadd.f32 %v2916, %v2924
    %v2933 = vadd.f32 %v2917, %v2925
    %v2934 = vadd.f32 %v2918, %v2926
    %v2935 = vadd.f32 %v2919, %v2927
    %2944 = vrot.lane.b32.xlu0 %v2928, 96
    %v2945 = vpop.permute.xlu0 %2944
    %2946 = vrot.lane.b32.xlu0 %v2929, 96
    %v2947 = vpop.permute.xlu0 %2946
    %2948 = vrot.lane.b32.xlu0 %v2930, 96
    %v2949 = vpop.permute.xlu0 %2948
    %2950 = vrot.lane.b32.xlu0 %v2931, 96
    %v2951 = vpop.permute.xlu0 %2950
    %2952 = vrot.lane.b32.xlu0 %v2932, 96
    %v2953 = vpop.permute.xlu0 %2952
    %2954 = vrot.lane.b32.xlu0 %v2933, 96
    %v2955 = vpop.permute.xlu0 %2954
    %2956 = vrot.lane.b32.xlu0 %v2934, 96
    %v2957 = vpop.permute.xlu0 %2956
    %2958 = vrot.lane.b32.xlu0 %v2935, 96
    %v2959 = vpop.permute.xlu0 %2958
    %2968 = vst.msk [vmem:[#allocation8 + $0x7] sm:$0x1] %vm433, %v2945
    %2969 = vst.msk [vmem:[#allocation8 + $0xf] sm:$0x1] %vm433, %v2947
    %2970 = vst.msk [vmem:[#allocation8 + $0x17] sm:$0x1] %vm433, %v2949
    %2971 = vst.msk [vmem:[#allocation8 + $0x1f] sm:$0x1] %vm433, %v2951
    %2972 = vst.msk [vmem:[#allocation8 + $0x27] sm:$0x1] %vm433, %v2953
    %2973 = vst.msk [vmem:[#allocation8 + $0x2f] sm:$0x1] %vm433, %v2955
    %2974 = vst.msk [vmem:[#allocation8 + $0x37] sm:$0x1] %vm433, %v2957
    %2975 = vst.msk [vmem:[#allocation8 + $0x3f] sm:$0x1] %vm433, %v2959
    %v2976 = vrot.slane %v2929, 7
    %v2977 = vsel %vm451, %v2976, %v2928
    %v2978 = vrot.slane %v2930, 6
    %v2979 = vsel %vm454, %v2978, %v2977
    %v2980 = vrot.slane %v2931, 5
    %v2981 = vsel %vm457, %v2980, %v2979
    %v2982 = vrot.slane %v2932, 4
    %v2983 = vsel %vm460, %v2982, %v2981
    %v2984 = vrot.slane %v2933, 3
    %v2985 = vsel %vm463, %v2984, %v2983
    %v2986 = vrot.slane %v2934, 2
    %v2987 = vsel %vm466, %v2986, %v2985
    %v2988 = vrot.slane %v2935, 1
    %v2989 = vsel %vm469, %v2988, %v2987
    %2990 = vrot.lane.b32.xlu0 %v2989, 96
    %v2991 = vpop.permute.xlu0 %2990
    %2993 = vst.msk [vmem:[#allocation2] sm:$0xff] %vm63, %v2991
    // Predicated region
    $region26: #{tpu_custom_call.1} parent=1 // pred_check
      _
    $region27: #{tpu_custom_call.1} parent=1 // pred_check_branch
      %2995 = sbr.rel (0) target = $region29
    $region28: #{tpu_custom_call.1} parent=1 // pred_region
      %s2997 = ssub.s32 1024, 1024
      %2998 = vsyncadd [#allocation5], %s2997
      %s2999 = sshll.u32 [#allocation8], 4
      %s3000 = int_to_ptr.vmem [resolvable:$true] %s2999
      %3005 = dma.vmem_to_hbm [thread:$0]  %s3000, 1024, %s3, [#allocation5], 128, 128, 8
    $region29: #{tpu_custom_call.1} parent=1 // pred_fallthru
      _
    // Predicated region
    $region30: #{tpu_custom_call.1} parent=1 // pred_check
      _
    $region31: #{tpu_custom_call.1} parent=1 // pred_check_branch
      %3007 = sbr.rel (0) target = $region33
    $region32: #{tpu_custom_call.1} parent=1 // pred_region
      %3008 = dma.done [#allocation5], 1024
    $region33: #{tpu_custom_call.1} parent=1 // pred_fallthru
      _
    %3009 = vsyncpa [#allocation4], 1
    %3010 = vsyncpa [#allocation7], 1
    %3011 = vsyncpa [#allocation5], 1

</llo_original>
